<compile_context>
chip_gen: v6e
topology: v6e:2x2x1
jax: 0.10.0
libtpu: 0.0.40
codegen_flags: <defaults>
</compile_context>

<pallas_src>
import functools

import jax
import jax.numpy as jnp
from jax import lax
from jax.experimental import pallas as pl
from jax.experimental.pallas import tpu as pltpu

_EPS = 1e-5   # torch.nn.LayerNorm default eps
_H1 = 256     # hidden width of the first-layer encoders / st_dec2
_H2 = 10      # hidden width of the second-layer encoders


# ----------------------------------------------------------------------------
# In-kernel helpers
# ----------------------------------------------------------------------------
def _ln_relu(y, g, b):
    """LayerNorm (last dim, biased variance, eps=1e-5) followed by ReLU."""
    m = jnp.mean(y, axis=-1, keepdims=True)
    v = jnp.mean(jnp.square(y - m), axis=-1, keepdims=True)
    return jnp.maximum((y - m) * lax.rsqrt(v + _EPS) * g + b, 0.0)


def _full_spec(shape):
    nd = len(shape)
    return pl.BlockSpec(shape, lambda i, _nd=nd: (0,) * _nd)


# ----------------------------------------------------------------------------
# Fused kernels
# ----------------------------------------------------------------------------
def _gimvi_train_kernel(x_ref,
                        w1_ref, b1_ref, g1_ref, be1_ref,      # enc layer 1 (din, 4*256)
                        w2_ref, b2_ref, g2_ref, be2_ref,      # enc layer 2 (256, 4*10)
                        wd2_ref, bd2_ref, gd2_ref, bed2_ref,  # st_dec2 (10, 256)
                        wd1_ref, bd1_ref,                     # st_dec1 (256, din), no norm
                        h1_ref, h2_ref, dec_ref, *, n):
    # x rows [0:n]   = sti  (real / st branches)
    # x rows [n:2n]  = con  (sc / fake-style branches)
    x = x_ref[...]                                              # (2n, din)

    # --- layer 1: one wide matmul, then per-256-block LayerNorm+ReLU -------
    h1 = jnp.dot(x, w1_ref[...], preferred_element_type=jnp.float32) + b1_ref[...]
    z1 = []   # [st_cont1, st_style1, sc_cont1, fake_style1] (each (2n, 256))
    for i in range(4):
        lo, hi = i * _H1, (i + 1) * _H1
        z = _ln_relu(h1[:, lo:hi], g1_ref[:, lo:hi], be1_ref[:, lo:hi])
        z1.append(z)
        h1_ref[:, lo:hi] = z                                    # lane-aligned store

    # --- layer 2: four (2n,256)@(256,10) matmuls from the packed weight ----
    w2 = w2_ref[...]
    z2 = []   # [st_cont2, st_style2, sc_cont2, fake_style2] (each (2n, 10))
    for i in range(4):
        lo, hi = i * _H2, (i + 1) * _H2
        pre = jnp.dot(z1[i], w2[:, lo:hi],
                      preferred_element_type=jnp.float32) + b2_ref[:, lo:hi]
        z = _ln_relu(pre, g2_ref[:, lo:hi], be2_ref[:, lo:hi])
        z2.append(z)
        h2_ref[:, lo:hi] = z

    st_cont1, st_style1, sc_cont1, fake_style1 = z1
    st_cont2, st_style2, sc_cont2, fake_style2 = z2

    # --- scalar means (style - fake_style).mean(), valid rows only ---------
    m2 = jnp.mean(st_style2[0:n, :] - fake_style2[n:2 * n, :])
    m1 = jnp.mean(st_style1[0:n, :] - fake_style1[n:2 * n, :])

    # rows [0:n] take the "real" path, rows [n:2n] the "fake" path
    row = lax.broadcasted_iota(jnp.int32, (2 * n, 1), 0)
    is_real = row < n

    d2_in = jnp.where(is_real, st_cont2 * st_style2, sc_cont2 * m2)      # (2n, 10)
    u2 = jnp.dot(d2_in, wd2_ref[...],
                 preferred_element_type=jnp.float32) + bd2_ref[...]      # (2n, 256)
    u2 = _ln_relu(u2, gd2_ref[...], bed2_ref[...])

    skip = jnp.where(is_real, st_cont1 * st_style1, sc_cont1 * m1)       # (2n, 256)
    dec = jnp.dot(u2 + skip, wd1_ref[...],
                  preferred_element_type=jnp.float32) + bd1_ref[...]     # (2n, din)
    dec_ref[...] = dec                                                   # no norm / relu


def _gimvi_eval_kernel(x_ref,
                       w1_ref, b1_ref, g1_ref, be1_ref,       # (din, 512): [sc_enc1_cont | enc_style1]
                       w2_ref, b2_ref, g2_ref, be2_ref,       # (256, 20):  [sc_enc2_cont | enc_style2]
                       wd2_ref, bd2_ref, gd2_ref, bed2_ref,
                       wd1_ref, bd1_ref,
                       dec_ref, *, n):
    # x rows [0:n] = con (content path), rows [n:2n] = sti (style path)
    x = x_ref[...]
    h1 = jnp.dot(x, w1_ref[...], preferred_element_type=jnp.float32) + b1_ref[...]
    a = _ln_relu(h1[:, 0:_H1], g1_ref[:, 0:_H1], be1_ref[:, 0:_H1])          # sc_cont1 valid rows 0:n
    b = _ln_relu(h1[:, _H1:2 * _H1], g1_ref[:, _H1:2 * _H1],
                 be1_ref[:, _H1:2 * _H1])                                    # fake_style1 valid rows n:2n

    w2 = w2_ref[...]
    sc2 = _ln_relu(jnp.dot(a, w2[:, 0:_H2],
                           preferred_element_type=jnp.float32) + b2_ref[:, 0:_H2],
                   g2_ref[:, 0:_H2], be2_ref[:, 0:_H2])
    fs2 = _ln_relu(jnp.dot(b, w2[:, _H2:2 * _H2],
                           preferred_element_type=jnp.float32) + b2_ref[:, _H2:2 * _H2],
                   g2_ref[:, _H2:2 * _H2], be2_ref[:, _H2:2 * _H2])

    d2_in = sc2[0:n, :] * fs2[n:2 * n, :]                                    # (n, 10)
    u2 = _ln_relu(jnp.dot(d2_in, wd2_ref[...],
                          preferred_element_type=jnp.float32) + bd2_ref[...],
                  gd2_ref[...], bed2_ref[...])                               # (n, 256)
    skip = a[0:n, :] * b[n:2 * n, :]
    dec_ref[...] = jnp.dot(u2 + skip, wd1_ref[...],
                           preferred_element_type=jnp.float32) + bd1_ref[...]


# ----------------------------------------------------------------------------
# Wrappers (jitted)
# ----------------------------------------------------------------------------
_COMPILER_PARAMS = pltpu.CompilerParams(dimension_semantics=("arbitrary",))


def _train_forward(packed, con, sti):
    n, din = sti.shape
    x = jnp.concatenate([sti, con], axis=0)                    # (2n, din)
    args = (x,
            packed["w_enc1"], packed["b_enc1"], packed["g_enc1"], packed["beta_enc1"],
            packed["w_enc2"], packed["b_enc2"], packed["g_enc2"], packed["beta_enc2"],
            packed["w_dec2"], packed["b_dec2"], packed["g_dec2"], packed["beta_dec2"],
            packed["w_dec1"], packed["b_dec1"])
    out_shapes = (jax.ShapeDtypeStruct((2 * n, 4 * _H1), jnp.float32),
                  jax.ShapeDtypeStruct((2 * n, 4 * _H2), jnp.float32),
                  jax.ShapeDtypeStruct((2 * n, din), jnp.float32))
    h1, h2, dec = pl.pallas_call(
        functools.partial(_gimvi_train_kernel, n=n),
        out_shape=out_shapes,
        grid=(1,),
        in_specs=[_full_spec(a.shape) for a in args],
        out_specs=tuple(_full_spec(s.shape) for s in out_shapes),
        compiler_params=_COMPILER_PARAMS,
    )(*args)

    return {
        "st_cont1": h1[0:n, 0:_H1],
        "st_style1": h1[0:n, _H1:2 * _H1],
        "sc_cont1": h1[n:2 * n, 2 * _H1:3 * _H1],
        "fake_style1": h1[n:2 * n, 3 * _H1:4 * _H1],
        "st_cont2": h2[0:n, 0:_H2],
        "st_style2": h2[0:n, _H2:2 * _H2],
        "sc_cont2": h2[n:2 * n, 2 * _H2:3 * _H2],
        "fake_style2": h2[n:2 * n, 3 * _H2:4 * _H2],
        "st_real": dec[0:n],
        "st_fake": dec[n:2 * n],
    }


def _eval_forward(packed, con, sti):
    n, din = con.shape
    x = jnp.concatenate([con, sti], axis=0)                    # (2n, din)
    # eval path only needs the sc_enc1_cont / enc_style1 (blocks 2,3) weights
    args = (x,
            packed["w_enc1"][:, 2 * _H1:4 * _H1], packed["b_enc1"][:, 2 * _H1:4 * _H1],
            packed["g_enc1"][:, 2 * _H1:4 * _H1], packed["beta_enc1"][:, 2 * _H1:4 * _H1],
            packed["w_enc2"][:, 2 * _H2:4 * _H2], packed["b_enc2"][:, 2 * _H2:4 * _H2],
            packed["g_enc2"][:, 2 * _H2:4 * _H2], packed["beta_enc2"][:, 2 * _H2:4 * _H2],
            packed["w_dec2"], packed["b_dec2"], packed["g_dec2"], packed["beta_dec2"],
            packed["w_dec1"], packed["b_dec1"])
    out_shape = jax.ShapeDtypeStruct((n, din), jnp.float32)
    dec = pl.pallas_call(
        functools.partial(_gimvi_eval_kernel, n=n),
        out_shape=out_shape,
        grid=(1,),
        in_specs=[_full_spec(a.shape) for a in args],
        out_specs=_full_spec(out_shape.shape),
        compiler_params=_COMPILER_PARAMS,
    )(*args)
    return {"st_fake": dec}


@functools.partial(jax.jit, static_argnames=("istrain",))
def gimvi_vae_forward(packed, con, sti, sty, istrain=True):
    del sty  # unused by the reference forward (kept for signature parity)
    if istrain:
        return _train_forward(packed, con, sti)
    return _eval_forward(packed, con, sti)


# ----------------------------------------------------------------------------
# Parameter construction / packing (deterministic, synthetic)
# ----------------------------------------------------------------------------
def init_mlp_params(key, din, dout):
    kw, kb = jax.random.split(key)
    return {
        "w": jax.random.normal(kw, (din, dout), jnp.float32) * 0.05,
        "b": jax.random.normal(kb, (dout,), jnp.float32) * 0.05,
        "g": jnp.ones((dout,), jnp.float32),      # LayerNorm gamma
        "beta": jnp.zeros((dout,), jnp.float32),  # LayerNorm beta
    }


_LAYER_DIMS = {
    "st_enc1_cont": (None, 256), "st_enc2_cont": (256, 10),
    "st_enc1_style": (None, 256), "st_enc2_style": (256, 10),
    "st_dec2": (10, 256), "st_dec1": (256, None),
    "sc_enc1_cont": (None, 256), "sc_enc2_cont": (256, 10),
    "enc_style1": (None, 256), "enc_style2": (256, 10),
}


def init_gimvi_params(key, input_dim):
    keys = jax.random.split(key, len(_LAYER_DIMS))
    out = {}
    for k, (name, (din, dout)) in zip(keys, _LAYER_DIMS.items()):
        din = input_dim if din is None else din
        dout = input_dim if dout is None else dout
        out[name] = init_mlp_params(k, din, dout)
    return out


_ENC1_ORDER = ("st_enc1_cont", "st_enc1_style", "sc_enc1_cont", "enc_style1")
_ENC2_ORDER = ("st_enc2_cont", "st_enc2_style", "sc_enc2_cont", "enc_style2")


def pack_gimvi_params(params):
    """Pre-concatenate the parallel encoder branches into wide matmul operands."""
    def cat_w(names):
        return jnp.concatenate([params[m]["w"] for m in names], axis=1)

    def cat_v(names, key):
        return jnp.concatenate([params[m][key] for m in names], axis=0).reshape(1, -1)

    return {
        "w_enc1": cat_w(_ENC1_ORDER), "b_enc1": cat_v(_ENC1_ORDER, "b"),
        "g_enc1": cat_v(_ENC1_ORDER, "g"), "beta_enc1": cat_v(_ENC1_ORDER, "beta"),
        "w_enc2": cat_w(_ENC2_ORDER), "b_enc2": cat_v(_ENC2_ORDER, "b"),
        "g_enc2": cat_v(_ENC2_ORDER, "g"), "beta_enc2": cat_v(_ENC2_ORDER, "beta"),
        "w_dec2": params["st_dec2"]["w"], "b_dec2": params["st_dec2"]["b"].reshape(1, -1),
        "g_dec2": params["st_dec2"]["g"].reshape(1, -1),
        "beta_dec2": params["st_dec2"]["beta"].reshape(1, -1),
        "w_dec1": params["st_dec1"]["w"], "b_dec1": params["st_dec1"]["b"].reshape(1, -1),
    }


# ----------------------------------------------------------------------------
# Pure-JAX reference (mirrors the PyTorch module) for a sanity check
# ----------------------------------------------------------------------------
def _mlp_ref(p, x, use_norm=True):
    y = x @ p["w"] + p["b"]
    if use_norm:
        m = y.mean(-1, keepdims=True)
        v = ((y - m) ** 2).mean(-1, keepdims=True)
        y = (y - m) / jnp.sqrt(v + _EPS) * p["g"] + p["beta"]
        y = jnp.maximum(y, 0.0)
    return y


def gimvi_ref(params, con, sti, istrain=True):
    mlp = lambda name, x, un=True: _mlp_ref(params[name], x, un)
    if istrain:
        st_cont1 = mlp("st_enc1_cont", sti)
        st_cont2 = mlp("st_enc2_cont", st_cont1)
        st_style1 = mlp("st_enc1_style", sti)
        st_style2 = mlp("st_enc2_style", st_style1)
        sc_cont1 = mlp("sc_enc1_cont", con)
        sc_cont2 = mlp("sc_enc2_cont", sc_cont1)
        fake_style1 = mlp("enc_style1", con)
        fake_style2 = mlp("enc_style2", fake_style1)
        real_up2 = mlp("st_dec2", st_cont2 * st_style2)
        real_up1 = mlp("st_dec1", real_up2 + st_cont1 * st_style1, False)
        fake_up2 = mlp("st_dec2", sc_cont2 * (st_style2 - fake_style2).mean())
        fake_up1 = mlp("st_dec1", fake_up2 + sc_cont1 * (st_style1 - fake_style1).mean(), False)
        return {"st_cont1": st_cont1, "st_cont2": st_cont2, "sc_cont1": sc_cont1,
                "sc_cont2": sc_cont2, "st_style1": st_style1, "st_style2": st_style2,
                "fake_style1": fake_style1, "fake_style2": fake_style2,
                "st_real": real_up1, "st_fake": fake_up1}
    sc_cont1 = mlp("sc_enc1_cont", con)
    sc_cont2 = mlp("sc_enc2_cont", sc_cont1)
    fake_style1 = mlp("enc_style1", sti)
    fake_style2 = mlp("enc_style2", fake_style1)
    fake_up2 = mlp("st_dec2", sc_cont2 * fake_style2)
    fake_up1 = mlp("st_dec1", fake_up2 + sc_cont1 * fake_style1, False)
    return {"st_fake": fake_up1}


# ----------------------------------------------------------------------------
if __name__ == "__main__":
    INPUT_DIM = 32   # opt.input_dim
    BATCH = 4

    root = jax.random.PRNGKey(0)
    kp, kcon, ksti, ksty = jax.random.split(root, 4)

    params = init_gimvi_params(kp, INPUT_DIM)
    packed = pack_gimvi_params(params)
    con = jax.random.normal(kcon, (BATCH, INPUT_DIM), jnp.float32)
    sti = jax.random.normal(ksti, (BATCH, INPUT_DIM), jnp.float32)
    sty = jax.random.normal(ksty, (BATCH, INPUT_DIM), jnp.float32)  # unused, parity only

    out = gimvi_vae_forward(packed, con, sti, sty, istrain=True)
    out = jax.block_until_ready(out)
    out_eval = gimvi_vae_forward(packed, con, sti, sty, istrain=False)
    out_eval = jax.block_until_ready(out_eval)

    # shape sanity
    assert out["st_real"].shape == (BATCH, INPUT_DIM)
    assert out["st_fake"].shape == (BATCH, INPUT_DIM)
    assert out["st_cont2"].shape == (BATCH, 10)
    assert out_eval["st_fake"].shape == (BATCH, INPUT_DIM)

    # numerical sanity against a pure-JAX reference of the PyTorch module
    ref = gimvi_ref(params, con, sti, istrain=True)
    for k in ref:
        assert jnp.allclose(out[k], ref[k], atol=5e-3, rtol=5e-3), k
    ref_eval = gimvi_ref(params, con, sti, istrain=False)
    assert jnp.allclose(out_eval["st_fake"], ref_eval["st_fake"], atol=5e-3, rtol=5e-3)

    print("KERNEL_OK")
</pallas_src>

<mosaic_0001>
module attributes {stable_mosaic.version = 11 : i64} {
  func.func @_gimvi_train_kernel(%arg0: i32, %arg1: memref<8x32xf32, #tpu.memory_space<vmem>>, %arg2: memref<32x1024xf32, #tpu.memory_space<vmem>>, %arg3: memref<1x1024xf32, #tpu.memory_space<vmem>>, %arg4: memref<1x1024xf32, #tpu.memory_space<vmem>>, %arg5: memref<1x1024xf32, #tpu.memory_space<vmem>>, %arg6: memref<256x40xf32, #tpu.memory_space<vmem>>, %arg7: memref<1x40xf32, #tpu.memory_space<vmem>>, %arg8: memref<1x40xf32, #tpu.memory_space<vmem>>, %arg9: memref<1x40xf32, #tpu.memory_space<vmem>>, %arg10: memref<10x256xf32, #tpu.memory_space<vmem>>, %arg11: memref<1x256xf32, #tpu.memory_space<vmem>>, %arg12: memref<1x256xf32, #tpu.memory_space<vmem>>, %arg13: memref<1x256xf32, #tpu.memory_space<vmem>>, %arg14: memref<256x32xf32, #tpu.memory_space<vmem>>, %arg15: memref<1x32xf32, #tpu.memory_space<vmem>>, %arg16: memref<8x1024xf32, #tpu.memory_space<vmem>>, %arg17: memref<8x40xf32, #tpu.memory_space<vmem>>, %arg18: memref<8x32xf32, #tpu.memory_space<vmem>>) attributes {dimension_semantics = [#tpu.dimension_semantics<arbitrary>], iteration_bounds = array<i64: 1>, scalar_prefetch = 0 : i64, scratch_operands = 0 : i64, tpu.core_type = #tpu.core_type<tc>, window_params = [{pipeline_mode = #tpu.pipeline_mode<synchronous>, transform_indices = @transform_0, window_bounds = array<i64: 8, 32>}, {pipeline_mode = #tpu.pipeline_mode<synchronous>, transform_indices = @transform_1, window_bounds = array<i64: 32, 1024>}, {pipeline_mode = #tpu.pipeline_mode<synchronous>, transform_indices = @transform_2, window_bounds = array<i64: 1, 1024>}, {pipeline_mode = #tpu.pipeline_mode<synchronous>, transform_indices = @transform_3, window_bounds = array<i64: 1, 1024>}, {pipeline_mode = #tpu.pipeline_mode<synchronous>, transform_indices = @transform_4, window_bounds = array<i64: 1, 1024>}, {pipeline_mode = #tpu.pipeline_mode<synchronous>, transform_indices = @transform_5, window_bounds = array<i64: 256, 40>}, {pipeline_mode = #tpu.pipeline_mode<synchronous>, transform_indices = @transform_6, window_bounds = array<i64: 1, 40>}, {pipeline_mode = #tpu.pipeline_mode<synchronous>, transform_indices = @transform_7, window_bounds = array<i64: 1, 40>}, {pipeline_mode = #tpu.pipeline_mode<synchronous>, transform_indices = @transform_8, window_bounds = array<i64: 1, 40>}, {pipeline_mode = #tpu.pipeline_mode<synchronous>, transform_indices = @transform_9, window_bounds = array<i64: 10, 256>}, {pipeline_mode = #tpu.pipeline_mode<synchronous>, transform_indices = @transform_10, window_bounds = array<i64: 1, 256>}, {pipeline_mode = #tpu.pipeline_mode<synchronous>, transform_indices = @transform_11, window_bounds = array<i64: 1, 256>}, {pipeline_mode = #tpu.pipeline_mode<synchronous>, transform_indices = @transform_12, window_bounds = array<i64: 1, 256>}, {pipeline_mode = #tpu.pipeline_mode<synchronous>, transform_indices = @transform_13, window_bounds = array<i64: 256, 32>}, {pipeline_mode = #tpu.pipeline_mode<synchronous>, transform_indices = @transform_14, window_bounds = array<i64: 1, 32>}, {pipeline_mode = #tpu.pipeline_mode<synchronous>, transform_indices = @transform_15, window_bounds = array<i64: 8, 1024>}, {pipeline_mode = #tpu.pipeline_mode<synchronous>, transform_indices = @transform_16, window_bounds = array<i64: 8, 40>}, {pipeline_mode = #tpu.pipeline_mode<synchronous>, transform_indices = @transform_17, window_bounds = array<i64: 8, 32>}]} {
    %c0 = arith.constant 0 : index
    %c0_0 = arith.constant 0 : index
    %0 = vector.load %arg1[%c0, %c0_0] : memref<8x32xf32, #tpu.memory_space<vmem>>, vector<8x32xf32>
    %c0_1 = arith.constant 0 : index
    %c0_2 = arith.constant 0 : index
    %1 = vector.load %arg2[%c0_1, %c0_2] : memref<32x1024xf32, #tpu.memory_space<vmem>>, vector<32x1024xf32>
    %cst = arith.constant dense<0.000000e+00> : vector<8x1024xf32>
    %2 = tpu.matmul %0, %1, %cst {dimension_numbers = #tpu.dot_dimension_numbers<[1], [0], [0], [1], [0, 0, 1, 1], [], []>} : vector<8x32xf32>, vector<32x1024xf32>, vector<8x1024xf32> -> vector<8x1024xf32>
    %c0_3 = arith.constant 0 : index
    %c0_4 = arith.constant 0 : index
    %3 = vector.load %arg3[%c0_3, %c0_4] : memref<1x1024xf32, #tpu.memory_space<vmem>>, vector<1x1024xf32>
    %4 = vector.broadcast %3 : vector<1x1024xf32> to vector<8x1024xf32>
    %5 = arith.addf %2, %4 : vector<8x1024xf32>
    %6 = vector.extract_strided_slice %5 {offsets = [0, 0], sizes = [8, 256], strides = [1, 1]} : vector<8x1024xf32> to vector<8x256xf32>
    %c0_5 = arith.constant 0 : index
    %c0_6 = arith.constant 0 : index
    %7 = vector.load %arg4[%c0_5, %c0_6] : memref<1x1024xf32, #tpu.memory_space<vmem>>, vector<1x256xf32>
    %c0_7 = arith.constant 0 : index
    %c0_8 = arith.constant 0 : index
    %8 = vector.load %arg5[%c0_7, %c0_8] : memref<1x1024xf32, #tpu.memory_space<vmem>>, vector<1x256xf32>
    %cst_9 = arith.constant dense<0.000000e+00> : vector<8xf32>
    %9 = vector.multi_reduction <add>, %6, %cst_9 [1] : vector<8x256xf32> to vector<8xf32>
    %10 = vector.shape_cast %9 : vector<8xf32> to vector<8x1xf32>
    %cst_10 = arith.constant 2.560000e+02 : f32
    %11 = vector.broadcast %cst_10 : f32 to vector<8x1xf32>
    %12 = arith.divf %10, %11 : vector<8x1xf32>
    %13 = vector.broadcast %12 : vector<8x1xf32> to vector<8x256xf32>
    %14 = arith.subf %6, %13 : vector<8x256xf32>
    %15 = arith.mulf %14, %14 : vector<8x256xf32>
    %cst_11 = arith.constant dense<0.000000e+00> : vector<8xf32>
    %16 = vector.multi_reduction <add>, %15, %cst_11 [1] : vector<8x256xf32> to vector<8xf32>
    %17 = vector.shape_cast %16 : vector<8xf32> to vector<8x1xf32>
    %cst_12 = arith.constant 2.560000e+02 : f32
    %18 = vector.broadcast %cst_12 : f32 to vector<8x1xf32>
    %19 = arith.divf %17, %18 : vector<8x1xf32>
    %20 = vector.broadcast %12 : vector<8x1xf32> to vector<8x256xf32>
    %21 = arith.subf %6, %20 : vector<8x256xf32>
    %cst_13 = arith.constant 9.99999974E-6 : f32
    %22 = vector.broadcast %cst_13 : f32 to vector<8x1xf32>
    %23 = arith.addf %19, %22 : vector<8x1xf32>
    %24 = math.rsqrt %23 : vector<8x1xf32>
    %25 = vector.broadcast %24 : vector<8x1xf32> to vector<8x256xf32>
    %26 = arith.mulf %21, %25 : vector<8x256xf32>
    %27 = vector.broadcast %7 : vector<1x256xf32> to vector<8x256xf32>
    %28 = arith.mulf %26, %27 : vector<8x256xf32>
    %29 = vector.broadcast %8 : vector<1x256xf32> to vector<8x256xf32>
    %30 = arith.addf %28, %29 : vector<8x256xf32>
    %cst_14 = arith.constant 0.000000e+00 : f32
    %31 = vector.broadcast %cst_14 : f32 to vector<8x256xf32>
    %32 = arith.maximumf %30, %31 : vector<8x256xf32>
    %c0_15 = arith.constant 0 : index
    %c0_16 = arith.constant 0 : index
    %33 = vector.load %arg16[%c0_15, %c0_16] : memref<8x1024xf32, #tpu.memory_space<vmem>>, vector<8x256xf32>
    tpu.vector_store %arg16[%c0_15, %c0_16], %32 {strides = array<i32>} : memref<8x1024xf32, #tpu.memory_space<vmem>>, vector<8x256xf32>,
    %34 = vector.extract_strided_slice %5 {offsets = [0, 256], sizes = [8, 256], strides = [1, 1]} : vector<8x1024xf32> to vector<8x256xf32>
    %c0_17 = arith.constant 0 : index
    %c256 = arith.constant 256 : index
    %35 = vector.load %arg4[%c0_17, %c256] : memref<1x1024xf32, #tpu.memory_space<vmem>>, vector<1x256xf32>
    %c0_18 = arith.constant 0 : index
    %c256_19 = arith.constant 256 : index
    %36 = vector.load %arg5[%c0_18, %c256_19] : memref<1x1024xf32, #tpu.memory_space<vmem>>, vector<1x256xf32>
    %cst_20 = arith.constant dense<0.000000e+00> : vector<8xf32>
    %37 = vector.multi_reduction <add>, %34, %cst_20 [1] : vector<8x256xf32> to vector<8xf32>
    %38 = vector.shape_cast %37 : vector<8xf32> to vector<8x1xf32>
    %cst_21 = arith.constant 2.560000e+02 : f32
    %39 = vector.broadcast %cst_21 : f32 to vector<8x1xf32>
    %40 = arith.divf %38, %39 : vector<8x1xf32>
    %41 = vector.broadcast %40 : vector<8x1xf32> to vector<8x256xf32>
    %42 = arith.subf %34, %41 : vector<8x256xf32>
    %43 = arith.mulf %42, %42 : vector<8x256xf32>
    %cst_22 = arith.constant dense<0.000000e+00> : vector<8xf32>
    %44 = vector.multi_reduction <add>, %43, %cst_22 [1] : vector<8x256xf32> to vector<8xf32>
    %45 = vector.shape_cast %44 : vector<8xf32> to vector<8x1xf32>
    %cst_23 = arith.constant 2.560000e+02 : f32
    %46 = vector.broadcast %cst_23 : f32 to vector<8x1xf32>
    %47 = arith.divf %45, %46 : vector<8x1xf32>
    %48 = vector.broadcast %40 : vector<8x1xf32> to vector<8x256xf32>
    %49 = arith.subf %34, %48 : vector<8x256xf32>
    %cst_24 = arith.constant 9.99999974E-6 : f32
    %50 = vector.broadcast %cst_24 : f32 to vector<8x1xf32>
    %51 = arith.addf %47, %50 : vector<8x1xf32>
    %52 = math.rsqrt %51 : vector<8x1xf32>
    %53 = vector.broadcast %52 : vector<8x1xf32> to vector<8x256xf32>
    %54 = arith.mulf %49, %53 : vector<8x256xf32>
    %55 = vector.broadcast %35 : vector<1x256xf32> to vector<8x256xf32>
    %56 = arith.mulf %54, %55 : vector<8x256xf32>
    %57 = vector.broadcast %36 : vector<1x256xf32> to vector<8x256xf32>
    %58 = arith.addf %56, %57 : vector<8x256xf32>
    %cst_25 = arith.constant 0.000000e+00 : f32
    %59 = vector.broadcast %cst_25 : f32 to vector<8x256xf32>
    %60 = arith.maximumf %58, %59 : vector<8x256xf32>
    %c0_26 = arith.constant 0 : index
    %c256_27 = arith.constant 256 : index
    %61 = vector.load %arg16[%c0_26, %c256_27] : memref<8x1024xf32, #tpu.memory_space<vmem>>, vector<8x256xf32>
    tpu.vector_store %arg16[%c0_26, %c256_27], %60 {strides = array<i32>} : memref<8x1024xf32, #tpu.memory_space<vmem>>, vector<8x256xf32>,
    %62 = vector.extract_strided_slice %5 {offsets = [0, 512], sizes = [8, 256], strides = [1, 1]} : vector<8x1024xf32> to vector<8x256xf32>
    %c0_28 = arith.constant 0 : index
    %c512 = arith.constant 512 : index
    %63 = vector.load %arg4[%c0_28, %c512] : memref<1x1024xf32, #tpu.memory_space<vmem>>, vector<1x256xf32>
    %c0_29 = arith.constant 0 : index
    %c512_30 = arith.constant 512 : index
    %64 = vector.load %arg5[%c0_29, %c512_30] : memref<1x1024xf32, #tpu.memory_space<vmem>>, vector<1x256xf32>
    %cst_31 = arith.constant dense<0.000000e+00> : vector<8xf32>
    %65 = vector.multi_reduction <add>, %62, %cst_31 [1] : vector<8x256xf32> to vector<8xf32>
    %66 = vector.shape_cast %65 : vector<8xf32> to vector<8x1xf32>
    %cst_32 = arith.constant 2.560000e+02 : f32
    %67 = vector.broadcast %cst_32 : f32 to vector<8x1xf32>
    %68 = arith.divf %66, %67 : vector<8x1xf32>
    %69 = vector.broadcast %68 : vector<8x1xf32> to vector<8x256xf32>
    %70 = arith.subf %62, %69 : vector<8x256xf32>
    %71 = arith.mulf %70, %70 : vector<8x256xf32>
    %cst_33 = arith.constant dense<0.000000e+00> : vector<8xf32>
    %72 = vector.multi_reduction <add>, %71, %cst_33 [1] : vector<8x256xf32> to vector<8xf32>
    %73 = vector.shape_cast %72 : vector<8xf32> to vector<8x1xf32>
    %cst_34 = arith.constant 2.560000e+02 : f32
    %74 = vector.broadcast %cst_34 : f32 to vector<8x1xf32>
    %75 = arith.divf %73, %74 : vector<8x1xf32>
    %76 = vector.broadcast %68 : vector<8x1xf32> to vector<8x256xf32>
    %77 = arith.subf %62, %76 : vector<8x256xf32>
    %cst_35 = arith.constant 9.99999974E-6 : f32
    %78 = vector.broadcast %cst_35 : f32 to vector<8x1xf32>
    %79 = arith.addf %75, %78 : vector<8x1xf32>
    %80 = math.rsqrt %79 : vector<8x1xf32>
    %81 = vector.broadcast %80 : vector<8x1xf32> to vector<8x256xf32>
    %82 = arith.mulf %77, %81 : vector<8x256xf32>
    %83 = vector.broadcast %63 : vector<1x256xf32> to vector<8x256xf32>
    %84 = arith.mulf %82, %83 : vector<8x256xf32>
    %85 = vector.broadcast %64 : vector<1x256xf32> to vector<8x256xf32>
    %86 = arith.addf %84, %85 : vector<8x256xf32>
    %cst_36 = arith.constant 0.000000e+00 : f32
    %87 = vector.broadcast %cst_36 : f32 to vector<8x256xf32>
    %88 = arith.maximumf %86, %87 : vector<8x256xf32>
    %c0_37 = arith.constant 0 : index
    %c512_38 = arith.constant 512 : index
    %89 = vector.load %arg16[%c0_37, %c512_38] : memref<8x1024xf32, #tpu.memory_space<vmem>>, vector<8x256xf32>
    tpu.vector_store %arg16[%c0_37, %c512_38], %88 {strides = array<i32>} : memref<8x1024xf32, #tpu.memory_space<vmem>>, vector<8x256xf32>,
    %90 = vector.extract_strided_slice %5 {offsets = [0, 768], sizes = [8, 256], strides = [1, 1]} : vector<8x1024xf32> to vector<8x256xf32>
    %c0_39 = arith.constant 0 : index
    %c768 = arith.constant 768 : index
    %91 = vector.load %arg4[%c0_39, %c768] : memref<1x1024xf32, #tpu.memory_space<vmem>>, vector<1x256xf32>
    %c0_40 = arith.constant 0 : index
    %c768_41 = arith.constant 768 : index
    %92 = vector.load %arg5[%c0_40, %c768_41] : memref<1x1024xf32, #tpu.memory_space<vmem>>, vector<1x256xf32>
    %cst_42 = arith.constant dense<0.000000e+00> : vector<8xf32>
    %93 = vector.multi_reduction <add>, %90, %cst_42 [1] : vector<8x256xf32> to vector<8xf32>
    %94 = vector.shape_cast %93 : vector<8xf32> to vector<8x1xf32>
    %cst_43 = arith.constant 2.560000e+02 : f32
    %95 = vector.broadcast %cst_43 : f32 to vector<8x1xf32>
    %96 = arith.divf %94, %95 : vector<8x1xf32>
    %97 = vector.broadcast %96 : vector<8x1xf32> to vector<8x256xf32>
    %98 = arith.subf %90, %97 : vector<8x256xf32>
    %99 = arith.mulf %98, %98 : vector<8x256xf32>
    %cst_44 = arith.constant dense<0.000000e+00> : vector<8xf32>
    %100 = vector.multi_reduction <add>, %99, %cst_44 [1] : vector<8x256xf32> to vector<8xf32>
    %101 = vector.shape_cast %100 : vector<8xf32> to vector<8x1xf32>
    %cst_45 = arith.constant 2.560000e+02 : f32
    %102 = vector.broadcast %cst_45 : f32 to vector<8x1xf32>
    %103 = arith.divf %101, %102 : vector<8x1xf32>
    %104 = vector.broadcast %96 : vector<8x1xf32> to vector<8x256xf32>
    %105 = arith.subf %90, %104 : vector<8x256xf32>
    %cst_46 = arith.constant 9.99999974E-6 : f32
    %106 = vector.broadcast %cst_46 : f32 to vector<8x1xf32>
    %107 = arith.addf %103, %106 : vector<8x1xf32>
    %108 = math.rsqrt %107 : vector<8x1xf32>
    %109 = vector.broadcast %108 : vector<8x1xf32> to vector<8x256xf32>
    %110 = arith.mulf %105, %109 : vector<8x256xf32>
    %111 = vector.broadcast %91 : vector<1x256xf32> to vector<8x256xf32>
    %112 = arith.mulf %110, %111 : vector<8x256xf32>
    %113 = vector.broadcast %92 : vector<1x256xf32> to vector<8x256xf32>
    %114 = arith.addf %112, %113 : vector<8x256xf32>
    %cst_47 = arith.constant 0.000000e+00 : f32
    %115 = vector.broadcast %cst_47 : f32 to vector<8x256xf32>
    %116 = arith.maximumf %114, %115 : vector<8x256xf32>
    %c0_48 = arith.constant 0 : index
    %c768_49 = arith.constant 768 : index
    %117 = vector.load %arg16[%c0_48, %c768_49] : memref<8x1024xf32, #tpu.memory_space<vmem>>, vector<8x256xf32>
    tpu.vector_store %arg16[%c0_48, %c768_49], %116 {strides = array<i32>} : memref<8x1024xf32, #tpu.memory_space<vmem>>, vector<8x256xf32>,
    %c0_50 = arith.constant 0 : index
    %c0_51 = arith.constant 0 : index
    %118 = vector.load %arg6[%c0_50, %c0_51] : memref<256x40xf32, #tpu.memory_space<vmem>>, vector<256x40xf32>
    %119 = vector.extract_strided_slice %118 {offsets = [0, 0], sizes = [256, 10], strides = [1, 1]} : vector<256x40xf32> to vector<256x10xf32>
    %cst_52 = arith.constant dense<0.000000e+00> : vector<8x10xf32>
    %120 = tpu.matmul %32, %119, %cst_52 {dimension_numbers = #tpu.dot_dimension_numbers<[1], [0], [0], [1], [0, 0, 1, 1], [], []>} : vector<8x256xf32>, vector<256x10xf32>, vector<8x10xf32> -> vector<8x10xf32>
    %c0_53 = arith.constant 0 : index
    %c0_54 = arith.constant 0 : index
    %121 = vector.load %arg7[%c0_53, %c0_54] : memref<1x40xf32, #tpu.memory_space<vmem>>, vector<1x10xf32>
    %122 = vector.broadcast %121 : vector<1x10xf32> to vector<8x10xf32>
    %123 = arith.addf %120, %122 : vector<8x10xf32>
    %c0_55 = arith.constant 0 : index
    %c0_56 = arith.constant 0 : index
    %124 = vector.load %arg8[%c0_55, %c0_56] : memref<1x40xf32, #tpu.memory_space<vmem>>, vector<1x10xf32>
    %c0_57 = arith.constant 0 : index
    %c0_58 = arith.constant 0 : index
    %125 = vector.load %arg9[%c0_57, %c0_58] : memref<1x40xf32, #tpu.memory_space<vmem>>, vector<1x10xf32>
    %cst_59 = arith.constant dense<0.000000e+00> : vector<8xf32>
    %126 = vector.multi_reduction <add>, %123, %cst_59 [1] : vector<8x10xf32> to vector<8xf32>
    %127 = vector.shape_cast %126 : vector<8xf32> to vector<8x1xf32>
    %cst_60 = arith.constant 1.000000e+01 : f32
    %128 = vector.broadcast %cst_60 : f32 to vector<8x1xf32>
    %129 = arith.divf %127, %128 : vector<8x1xf32>
    %130 = vector.broadcast %129 : vector<8x1xf32> to vector<8x10xf32>
    %131 = arith.subf %123, %130 : vector<8x10xf32>
    %132 = arith.mulf %131, %131 : vector<8x10xf32>
    %cst_61 = arith.constant dense<0.000000e+00> : vector<8xf32>
    %133 = vector.multi_reduction <add>, %132, %cst_61 [1] : vector<8x10xf32> to vector<8xf32>
    %134 = vector.shape_cast %133 : vector<8xf32> to vector<8x1xf32>
    %cst_62 = arith.constant 1.000000e+01 : f32
    %135 = vector.broadcast %cst_62 : f32 to vector<8x1xf32>
    %136 = arith.divf %134, %135 : vector<8x1xf32>
    %137 = vector.broadcast %129 : vector<8x1xf32> to vector<8x10xf32>
    %138 = arith.subf %123, %137 : vector<8x10xf32>
    %cst_63 = arith.constant 9.99999974E-6 : f32
    %139 = vector.broadcast %cst_63 : f32 to vector<8x1xf32>
    %140 = arith.addf %136, %139 : vector<8x1xf32>
    %141 = math.rsqrt %140 : vector<8x1xf32>
    %142 = vector.broadcast %141 : vector<8x1xf32> to vector<8x10xf32>
    %143 = arith.mulf %138, %142 : vector<8x10xf32>
    %144 = vector.broadcast %124 : vector<1x10xf32> to vector<8x10xf32>
    %145 = arith.mulf %143, %144 : vector<8x10xf32>
    %146 = vector.broadcast %125 : vector<1x10xf32> to vector<8x10xf32>
    %147 = arith.addf %145, %146 : vector<8x10xf32>
    %cst_64 = arith.constant 0.000000e+00 : f32
    %148 = vector.broadcast %cst_64 : f32 to vector<8x10xf32>
    %149 = arith.maximumf %147, %148 : vector<8x10xf32>
    %c0_65 = arith.constant 0 : index
    %c0_66 = arith.constant 0 : index
    %150 = vector.load %arg17[%c0_65, %c0_66] : memref<8x40xf32, #tpu.memory_space<vmem>>, vector<8x10xf32>
    tpu.vector_store %arg17[%c0_65, %c0_66], %149 {strides = array<i32>} : memref<8x40xf32, #tpu.memory_space<vmem>>, vector<8x10xf32>,
    %151 = vector.extract_strided_slice %118 {offsets = [0, 10], sizes = [256, 10], strides = [1, 1]} : vector<256x40xf32> to vector<256x10xf32>
    %cst_67 = arith.constant dense<0.000000e+00> : vector<8x10xf32>
    %152 = tpu.matmul %60, %151, %cst_67 {dimension_numbers = #tpu.dot_dimension_numbers<[1], [0], [0], [1], [0, 0, 1, 1], [], []>} : vector<8x256xf32>, vector<256x10xf32>, vector<8x10xf32> -> vector<8x10xf32>
    %c0_68 = arith.constant 0 : index
    %c10 = arith.constant 10 : index
    %153 = vector.load %arg7[%c0_68, %c10] : memref<1x40xf32, #tpu.memory_space<vmem>>, vector<1x10xf32>
    %154 = vector.broadcast %153 : vector<1x10xf32> to vector<8x10xf32>
    %155 = arith.addf %152, %154 : vector<8x10xf32>
    %c0_69 = arith.constant 0 : index
    %c10_70 = arith.constant 10 : index
    %156 = vector.load %arg8[%c0_69, %c10_70] : memref<1x40xf32, #tpu.memory_space<vmem>>, vector<1x10xf32>
    %c0_71 = arith.constant 0 : index
    %c10_72 = arith.constant 10 : index
    %157 = vector.load %arg9[%c0_71, %c10_72] : memref<1x40xf32, #tpu.memory_space<vmem>>, vector<1x10xf32>
    %cst_73 = arith.constant dense<0.000000e+00> : vector<8xf32>
    %158 = vector.multi_reduction <add>, %155, %cst_73 [1] : vector<8x10xf32> to vector<8xf32>
    %159 = vector.shape_cast %158 : vector<8xf32> to vector<8x1xf32>
    %cst_74 = arith.constant 1.000000e+01 : f32
    %160 = vector.broadcast %cst_74 : f32 to vector<8x1xf32>
    %161 = arith.divf %159, %160 : vector<8x1xf32>
    %162 = vector.broadcast %161 : vector<8x1xf32> to vector<8x10xf32>
    %163 = arith.subf %155, %162 : vector<8x10xf32>
    %164 = arith.mulf %163, %163 : vector<8x10xf32>
    %cst_75 = arith.constant dense<0.000000e+00> : vector<8xf32>
    %165 = vector.multi_reduction <add>, %164, %cst_75 [1] : vector<8x10xf32> to vector<8xf32>
    %166 = vector.shape_cast %165 : vector<8xf32> to vector<8x1xf32>
    %cst_76 = arith.constant 1.000000e+01 : f32
    %167 = vector.broadcast %cst_76 : f32 to vector<8x1xf32>
    %168 = arith.divf %166, %167 : vector<8x1xf32>
    %169 = vector.broadcast %161 : vector<8x1xf32> to vector<8x10xf32>
    %170 = arith.subf %155, %169 : vector<8x10xf32>
    %cst_77 = arith.constant 9.99999974E-6 : f32
    %171 = vector.broadcast %cst_77 : f32 to vector<8x1xf32>
    %172 = arith.addf %168, %171 : vector<8x1xf32>
    %173 = math.rsqrt %172 : vector<8x1xf32>
    %174 = vector.broadcast %173 : vector<8x1xf32> to vector<8x10xf32>
    %175 = arith.mulf %170, %174 : vector<8x10xf32>
    %176 = vector.broadcast %156 : vector<1x10xf32> to vector<8x10xf32>
    %177 = arith.mulf %175, %176 : vector<8x10xf32>
    %178 = vector.broadcast %157 : vector<1x10xf32> to vector<8x10xf32>
    %179 = arith.addf %177, %178 : vector<8x10xf32>
    %cst_78 = arith.constant 0.000000e+00 : f32
    %180 = vector.broadcast %cst_78 : f32 to vector<8x10xf32>
    %181 = arith.maximumf %179, %180 : vector<8x10xf32>
    %c0_79 = arith.constant 0 : index
    %c10_80 = arith.constant 10 : index
    %182 = vector.load %arg17[%c0_79, %c10_80] : memref<8x40xf32, #tpu.memory_space<vmem>>, vector<8x10xf32>
    tpu.vector_store %arg17[%c0_79, %c10_80], %181 {strides = array<i32>} : memref<8x40xf32, #tpu.memory_space<vmem>>, vector<8x10xf32>,
    %183 = vector.extract_strided_slice %118 {offsets = [0, 20], sizes = [256, 10], strides = [1, 1]} : vector<256x40xf32> to vector<256x10xf32>
    %cst_81 = arith.constant dense<0.000000e+00> : vector<8x10xf32>
    %184 = tpu.matmul %88, %183, %cst_81 {dimension_numbers = #tpu.dot_dimension_numbers<[1], [0], [0], [1], [0, 0, 1, 1], [], []>} : vector<8x256xf32>, vector<256x10xf32>, vector<8x10xf32> -> vector<8x10xf32>
    %c0_82 = arith.constant 0 : index
    %c20 = arith.constant 20 : index
    %185 = vector.load %arg7[%c0_82, %c20] : memref<1x40xf32, #tpu.memory_space<vmem>>, vector<1x10xf32>
    %186 = vector.broadcast %185 : vector<1x10xf32> to vector<8x10xf32>
    %187 = arith.addf %184, %186 : vector<8x10xf32>
    %c0_83 = arith.constant 0 : index
    %c20_84 = arith.constant 20 : index
    %188 = vector.load %arg8[%c0_83, %c20_84] : memref<1x40xf32, #tpu.memory_space<vmem>>, vector<1x10xf32>
    %c0_85 = arith.constant 0 : index
    %c20_86 = arith.constant 20 : index
    %189 = vector.load %arg9[%c0_85, %c20_86] : memref<1x40xf32, #tpu.memory_space<vmem>>, vector<1x10xf32>
    %cst_87 = arith.constant dense<0.000000e+00> : vector<8xf32>
    %190 = vector.multi_reduction <add>, %187, %cst_87 [1] : vector<8x10xf32> to vector<8xf32>
    %191 = vector.shape_cast %190 : vector<8xf32> to vector<8x1xf32>
    %cst_88 = arith.constant 1.000000e+01 : f32
    %192 = vector.broadcast %cst_88 : f32 to vector<8x1xf32>
    %193 = arith.divf %191, %192 : vector<8x1xf32>
    %194 = vector.broadcast %193 : vector<8x1xf32> to vector<8x10xf32>
    %195 = arith.subf %187, %194 : vector<8x10xf32>
    %196 = arith.mulf %195, %195 : vector<8x10xf32>
    %cst_89 = arith.constant dense<0.000000e+00> : vector<8xf32>
    %197 = vector.multi_reduction <add>, %196, %cst_89 [1] : vector<8x10xf32> to vector<8xf32>
    %198 = vector.shape_cast %197 : vector<8xf32> to vector<8x1xf32>
    %cst_90 = arith.constant 1.000000e+01 : f32
    %199 = vector.broadcast %cst_90 : f32 to vector<8x1xf32>
    %200 = arith.divf %198, %199 : vector<8x1xf32>
    %201 = vector.broadcast %193 : vector<8x1xf32> to vector<8x10xf32>
    %202 = arith.subf %187, %201 : vector<8x10xf32>
    %cst_91 = arith.constant 9.99999974E-6 : f32
    %203 = vector.broadcast %cst_91 : f32 to vector<8x1xf32>
    %204 = arith.addf %200, %203 : vector<8x1xf32>
    %205 = math.rsqrt %204 : vector<8x1xf32>
    %206 = vector.broadcast %205 : vector<8x1xf32> to vector<8x10xf32>
    %207 = arith.mulf %202, %206 : vector<8x10xf32>
    %208 = vector.broadcast %188 : vector<1x10xf32> to vector<8x10xf32>
    %209 = arith.mulf %207, %208 : vector<8x10xf32>
    %210 = vector.broadcast %189 : vector<1x10xf32> to vector<8x10xf32>
    %211 = arith.addf %209, %210 : vector<8x10xf32>
    %cst_92 = arith.constant 0.000000e+00 : f32
    %212 = vector.broadcast %cst_92 : f32 to vector<8x10xf32>
    %213 = arith.maximumf %211, %212 : vector<8x10xf32>
    %c0_93 = arith.constant 0 : index
    %c20_94 = arith.constant 20 : index
    %214 = vector.load %arg17[%c0_93, %c20_94] : memref<8x40xf32, #tpu.memory_space<vmem>>, vector<8x10xf32>
    tpu.vector_store %arg17[%c0_93, %c20_94], %213 {strides = array<i32>} : memref<8x40xf32, #tpu.memory_space<vmem>>, vector<8x10xf32>,
    %215 = vector.extract_strided_slice %118 {offsets = [0, 30], sizes = [256, 10], strides = [1, 1]} : vector<256x40xf32> to vector<256x10xf32>
    %cst_95 = arith.constant dense<0.000000e+00> : vector<8x10xf32>
    %216 = tpu.matmul %116, %215, %cst_95 {dimension_numbers = #tpu.dot_dimension_numbers<[1], [0], [0], [1], [0, 0, 1, 1], [], []>} : vector<8x256xf32>, vector<256x10xf32>, vector<8x10xf32> -> vector<8x10xf32>
    %c0_96 = arith.constant 0 : index
    %c30 = arith.constant 30 : index
    %217 = vector.load %arg7[%c0_96, %c30] : memref<1x40xf32, #tpu.memory_space<vmem>>, vector<1x10xf32>
    %218 = vector.broadcast %217 : vector<1x10xf32> to vector<8x10xf32>
    %219 = arith.addf %216, %218 : vector<8x10xf32>
    %c0_97 = arith.constant 0 : index
    %c30_98 = arith.constant 30 : index
    %220 = vector.load %arg8[%c0_97, %c30_98] : memref<1x40xf32, #tpu.memory_space<vmem>>, vector<1x10xf32>
    %c0_99 = arith.constant 0 : index
    %c30_100 = arith.constant 30 : index
    %221 = vector.load %arg9[%c0_99, %c30_100] : memref<1x40xf32, #tpu.memory_space<vmem>>, vector<1x10xf32>
    %cst_101 = arith.constant dense<0.000000e+00> : vector<8xf32>
    %222 = vector.multi_reduction <add>, %219, %cst_101 [1] : vector<8x10xf32> to vector<8xf32>
    %223 = vector.shape_cast %222 : vector<8xf32> to vector<8x1xf32>
    %cst_102 = arith.constant 1.000000e+01 : f32
    %224 = vector.broadcast %cst_102 : f32 to vector<8x1xf32>
    %225 = arith.divf %223, %224 : vector<8x1xf32>
    %226 = vector.broadcast %225 : vector<8x1xf32> to vector<8x10xf32>
    %227 = arith.subf %219, %226 : vector<8x10xf32>
    %228 = arith.mulf %227, %227 : vector<8x10xf32>
    %cst_103 = arith.constant dense<0.000000e+00> : vector<8xf32>
    %229 = vector.multi_reduction <add>, %228, %cst_103 [1] : vector<8x10xf32> to vector<8xf32>
    %230 = vector.shape_cast %229 : vector<8xf32> to vector<8x1xf32>
    %cst_104 = arith.constant 1.000000e+01 : f32
    %231 = vector.broadcast %cst_104 : f32 to vector<8x1xf32>
    %232 = arith.divf %230, %231 : vector<8x1xf32>
    %233 = vector.broadcast %225 : vector<8x1xf32> to vector<8x10xf32>
    %234 = arith.subf %219, %233 : vector<8x10xf32>
    %cst_105 = arith.constant 9.99999974E-6 : f32
    %235 = vector.broadcast %cst_105 : f32 to vector<8x1xf32>
    %236 = arith.addf %232, %235 : vector<8x1xf32>
    %237 = math.rsqrt %236 : vector<8x1xf32>
    %238 = vector.broadcast %237 : vector<8x1xf32> to vector<8x10xf32>
    %239 = arith.mulf %234, %238 : vector<8x10xf32>
    %240 = vector.broadcast %220 : vector<1x10xf32> to vector<8x10xf32>
    %241 = arith.mulf %239, %240 : vector<8x10xf32>
    %242 = vector.broadcast %221 : vector<1x10xf32> to vector<8x10xf32>
    %243 = arith.addf %241, %242 : vector<8x10xf32>
    %cst_106 = arith.constant 0.000000e+00 : f32
    %244 = vector.broadcast %cst_106 : f32 to vector<8x10xf32>
    %245 = arith.maximumf %243, %244 : vector<8x10xf32>
    %c0_107 = arith.constant 0 : index
    %c30_108 = arith.constant 30 : index
    %246 = vector.load %arg17[%c0_107, %c30_108] : memref<8x40xf32, #tpu.memory_space<vmem>>, vector<8x10xf32>
    tpu.vector_store %arg17[%c0_107, %c30_108], %245 {strides = array<i32>} : memref<8x40xf32, #tpu.memory_space<vmem>>, vector<8x10xf32>,
    %247 = vector.extract_strided_slice %181 {offsets = [0, 0], sizes = [4, 10], strides = [1, 1]} : vector<8x10xf32> to vector<4x10xf32>
    %248 = vector.extract_strided_slice %245 {offsets = [4, 0], sizes = [4, 10], strides = [1, 1]} : vector<8x10xf32> to vector<4x10xf32>
    %249 = arith.subf %247, %248 : vector<4x10xf32>
    %250 = vector.shape_cast %249 : vector<4x10xf32> to vector<1x4x10xf32>
    %cst_109 = arith.constant dense<0.000000e+00> : vector<1xf32>
    %251 = vector.multi_reduction <add>, %250, %cst_109 [1, 2] : vector<1x4x10xf32> to vector<1xf32>
    %252 = vector.shape_cast %251 : vector<1xf32> to vector<1x1x1xf32>
    %253 = vector.extract %252[0, 0, 0] : f32 from vector<1x1x1xf32>
    %cst_110 = arith.constant 4.000000e+01 : f32
    %254 = arith.divf %253, %cst_110 : f32
    %255 = vector.extract_strided_slice %60 {offsets = [0, 0], sizes = [4, 256], strides = [1, 1]} : vector<8x256xf32> to vector<4x256xf32>
    %256 = vector.extract_strided_slice %116 {offsets = [4, 0], sizes = [4, 256], strides = [1, 1]} : vector<8x256xf32> to vector<4x256xf32>
    %257 = arith.subf %255, %256 : vector<4x256xf32>
    %258 = vector.shape_cast %257 : vector<4x256xf32> to vector<1x4x256xf32>
    %cst_111 = arith.constant dense<0.000000e+00> : vector<1xf32>
    %259 = vector.multi_reduction <add>, %258, %cst_111 [1, 2] : vector<1x4x256xf32> to vector<1xf32>
    %260 = vector.shape_cast %259 : vector<1xf32> to vector<1x1x1xf32>
    %261 = vector.extract %260[0, 0, 0] : f32 from vector<1x1x1xf32>
    %cst_112 = arith.constant 1.024000e+03 : f32
    %262 = arith.divf %261, %cst_112 : f32
    %263 = tpu.iota {dimensions = array<i32: 0>} : vector<8x1xi32>
    %c4_i32 = arith.constant 4 : i32
    %264 = vector.broadcast %c4_i32 : i32 to vector<8x1xi32>
    %265 = arith.cmpi slt, %263, %264 : vector<8x1xi32>
    %266 = arith.mulf %149, %181 : vector<8x10xf32>
    %267 = vector.broadcast %254 : f32 to vector<8x10xf32>
    %268 = arith.mulf %213, %267 : vector<8x10xf32>
    %269 = vector.shape_cast %265 : vector<8x1xi1> to vector<8x1xi1>
    %270 = vector.broadcast %269 : vector<8x1xi1> to vector<8x10xi1>
    %271 = arith.select %270, %266, %268 : vector<8x10xi1>, vector<8x10xf32>
    %c0_113 = arith.constant 0 : index
    %c0_114 = arith.constant 0 : index
    %272 = vector.load %arg10[%c0_113, %c0_114] : memref<10x256xf32, #tpu.memory_space<vmem>>, vector<10x256xf32>
    %cst_115 = arith.constant dense<0.000000e+00> : vector<8x256xf32>
    %273 = tpu.matmul %271, %272, %cst_115 {dimension_numbers = #tpu.dot_dimension_numbers<[1], [0], [0], [1], [0, 0, 1, 1], [], []>} : vector<8x10xf32>, vector<10x256xf32>, vector<8x256xf32> -> vector<8x256xf32>
    %c0_116 = arith.constant 0 : index
    %c0_117 = arith.constant 0 : index
    %274 = vector.load %arg11[%c0_116, %c0_117] : memref<1x256xf32, #tpu.memory_space<vmem>>, vector<1x256xf32>
    %275 = vector.broadcast %274 : vector<1x256xf32> to vector<8x256xf32>
    %276 = arith.addf %273, %275 : vector<8x256xf32>
    %c0_118 = arith.constant 0 : index
    %c0_119 = arith.constant 0 : index
    %277 = vector.load %arg12[%c0_118, %c0_119] : memref<1x256xf32, #tpu.memory_space<vmem>>, vector<1x256xf32>
    %c0_120 = arith.constant 0 : index
    %c0_121 = arith.constant 0 : index
    %278 = vector.load %arg13[%c0_120, %c0_121] : memref<1x256xf32, #tpu.memory_space<vmem>>, vector<1x256xf32>
    %cst_122 = arith.constant dense<0.000000e+00> : vector<8xf32>
    %279 = vector.multi_reduction <add>, %276, %cst_122 [1] : vector<8x256xf32> to vector<8xf32>
    %280 = vector.shape_cast %279 : vector<8xf32> to vector<8x1xf32>
    %cst_123 = arith.constant 2.560000e+02 : f32
    %281 = vector.broadcast %cst_123 : f32 to vector<8x1xf32>
    %282 = arith.divf %280, %281 : vector<8x1xf32>
    %283 = vector.broadcast %282 : vector<8x1xf32> to vector<8x256xf32>
    %284 = arith.subf %276, %283 : vector<8x256xf32>
    %285 = arith.mulf %284, %284 : vector<8x256xf32>
    %cst_124 = arith.constant dense<0.000000e+00> : vector<8xf32>
    %286 = vector.multi_reduction <add>, %285, %cst_124 [1] : vector<8x256xf32> to vector<8xf32>
    %287 = vector.shape_cast %286 : vector<8xf32> to vector<8x1xf32>
    %cst_125 = arith.constant 2.560000e+02 : f32
    %288 = vector.broadcast %cst_125 : f32 to vector<8x1xf32>
    %289 = arith.divf %287, %288 : vector<8x1xf32>
    %290 = vector.broadcast %282 : vector<8x1xf32> to vector<8x256xf32>
    %291 = arith.subf %276, %290 : vector<8x256xf32>
    %cst_126 = arith.constant 9.99999974E-6 : f32
    %292 = vector.broadcast %cst_126 : f32 to vector<8x1xf32>
    %293 = arith.addf %289, %292 : vector<8x1xf32>
    %294 = math.rsqrt %293 : vector<8x1xf32>
    %295 = vector.broadcast %294 : vector<8x1xf32> to vector<8x256xf32>
    %296 = arith.mulf %291, %295 : vector<8x256xf32>
    %297 = vector.broadcast %277 : vector<1x256xf32> to vector<8x256xf32>
    %298 = arith.mulf %296, %297 : vector<8x256xf32>
    %299 = vector.broadcast %278 : vector<1x256xf32> to vector<8x256xf32>
    %300 = arith.addf %298, %299 : vector<8x256xf32>
    %cst_127 = arith.constant 0.000000e+00 : f32
    %301 = vector.broadcast %cst_127 : f32 to vector<8x256xf32>
    %302 = arith.maximumf %300, %301 : vector<8x256xf32>
    %303 = arith.mulf %32, %60 : vector<8x256xf32>
    %304 = vector.broadcast %262 : f32 to vector<8x256xf32>
    %305 = arith.mulf %88, %304 : vector<8x256xf32>
    %306 = vector.shape_cast %265 : vector<8x1xi1> to vector<8x1xi1>
    %307 = vector.broadcast %306 : vector<8x1xi1> to vector<8x256xi1>
    %308 = arith.select %307, %303, %305 : vector<8x256xi1>, vector<8x256xf32>
    %309 = arith.addf %302, %308 : vector<8x256xf32>
    %c0_128 = arith.constant 0 : index
    %c0_129 = arith.constant 0 : index
    %310 = vector.load %arg14[%c0_128, %c0_129] : memref<256x32xf32, #tpu.memory_space<vmem>>, vector<256x32xf32>
    %cst_130 = arith.constant dense<0.000000e+00> : vector<8x32xf32>
    %311 = tpu.matmul %309, %310, %cst_130 {dimension_numbers = #tpu.dot_dimension_numbers<[1], [0], [0], [1], [0, 0, 1, 1], [], []>} : vector<8x256xf32>, vector<256x32xf32>, vector<8x32xf32> -> vector<8x32xf32>
    %c0_131 = arith.constant 0 : index
    %c0_132 = arith.constant 0 : index
    %312 = vector.load %arg15[%c0_131, %c0_132] : memref<1x32xf32, #tpu.memory_space<vmem>>, vector<1x32xf32>
    %313 = vector.broadcast %312 : vector<1x32xf32> to vector<8x32xf32>
    %314 = arith.addf %311, %313 : vector<8x32xf32>
    %c0_133 = arith.constant 0 : index
    %c0_134 = arith.constant 0 : index
    %315 = vector.load %arg18[%c0_133, %c0_134] : memref<8x32xf32, #tpu.memory_space<vmem>>, vector<8x32xf32>
    tpu.vector_store %arg18[%c0_133, %c0_134], %314 {strides = array<i32>} : memref<8x32xf32, #tpu.memory_space<vmem>>, vector<8x32xf32>,
    return
  }
  func.func @transform_0(%arg0: i32) -> (i32, i32) {
    %c0_i32 = arith.constant 0 : i32
    %c0_i32_0 = arith.constant 0 : i32
    %c0_i32_1 = arith.constant 0 : i32
    return %c0_i32, %c0_i32_0 : i32, i32
  }
  func.func @transform_1(%arg0: i32) -> (i32, i32) {
    %c0_i32 = arith.constant 0 : i32
    %c0_i32_0 = arith.constant 0 : i32
    %c0_i32_1 = arith.constant 0 : i32
    return %c0_i32, %c0_i32_0 : i32, i32
  }
  func.func @transform_2(%arg0: i32) -> (i32, i32) {
    %c0_i32 = arith.constant 0 : i32
    %c0_i32_0 = arith.constant 0 : i32
    %c0_i32_1 = arith.constant 0 : i32
    return %c0_i32, %c0_i32_0 : i32, i32
  }
  func.func @transform_3(%arg0: i32) -> (i32, i32) {
    %c0_i32 = arith.constant 0 : i32
    %c0_i32_0 = arith.constant 0 : i32
    %c0_i32_1 = arith.constant 0 : i32
    return %c0_i32, %c0_i32_0 : i32, i32
  }
  func.func @transform_4(%arg0: i32) -> (i32, i32) {
    %c0_i32 = arith.constant 0 : i32
    %c0_i32_0 = arith.constant 0 : i32
    %c0_i32_1 = arith.constant 0 : i32
    return %c0_i32, %c0_i32_0 : i32, i32
  }
  func.func @transform_5(%arg0: i32) -> (i32, i32) {
    %c0_i32 = arith.constant 0 : i32
    %c0_i32_0 = arith.constant 0 : i32
    %c0_i32_1 = arith.constant 0 : i32
    return %c0_i32, %c0_i32_0 : i32, i32
  }
  func.func @transform_6(%arg0: i32) -> (i32, i32) {
    %c0_i32 = arith.constant 0 : i32
    %c0_i32_0 = arith.constant 0 : i32
    %c0_i32_1 = arith.constant 0 : i32
    return %c0_i32, %c0_i32_0 : i32, i32
  }
  func.func @transform_7(%arg0: i32) -> (i32, i32) {
    %c0_i32 = arith.constant 0 : i32
    %c0_i32_0 = arith.constant 0 : i32
    %c0_i32_1 = arith.constant 0 : i32
    return %c0_i32, %c0_i32_0 : i32, i32
  }
  func.func @transform_8(%arg0: i32) -> (i32, i32) {
    %c0_i32 = arith.constant 0 : i32
    %c0_i32_0 = arith.constant 0 : i32
    %c0_i32_1 = arith.constant 0 : i32
    return %c0_i32, %c0_i32_0 : i32, i32
  }
  func.func @transform_9(%arg0: i32) -> (i32, i32) {
    %c0_i32 = arith.constant 0 : i32
    %c0_i32_0 = arith.constant 0 : i32
    %c0_i32_1 = arith.constant 0 : i32
    return %c0_i32, %c0_i32_0 : i32, i32
  }
  func.func @transform_10(%arg0: i32) -> (i32, i32) {
    %c0_i32 = arith.constant 0 : i32
    %c0_i32_0 = arith.constant 0 : i32
    %c0_i32_1 = arith.constant 0 : i32
    return %c0_i32, %c0_i32_0 : i32, i32
  }
  func.func @transform_11(%arg0: i32) -> (i32, i32) {
    %c0_i32 = arith.constant 0 : i32
    %c0_i32_0 = arith.constant 0 : i32
    %c0_i32_1 = arith.constant 0 : i32
    return %c0_i32, %c0_i32_0 : i32, i32
  }
  func.func @transform_12(%arg0: i32) -> (i32, i32) {
    %c0_i32 = arith.constant 0 : i32
    %c0_i32_0 = arith.constant 0 : i32
    %c0_i32_1 = arith.constant 0 : i32
    return %c0_i32, %c0_i32_0 : i32, i32
  }
  func.func @transform_13(%arg0: i32) -> (i32, i32) {
    %c0_i32 = arith.constant 0 : i32
    %c0_i32_0 = arith.constant 0 : i32
    %c0_i32_1 = arith.constant 0 : i32
    return %c0_i32, %c0_i32_0 : i32, i32
  }
  func.func @transform_14(%arg0: i32) -> (i32, i32) {
    %c0_i32 = arith.constant 0 : i32
    %c0_i32_0 = arith.constant 0 : i32
    %c0_i32_1 = arith.constant 0 : i32
    return %c0_i32, %c0_i32_0 : i32, i32
  }
  func.func @transform_15(%arg0: i32) -> (i32, i32) {
    %c0_i32 = arith.constant 0 : i32
    %c0_i32_0 = arith.constant 0 : i32
    %c0_i32_1 = arith.constant 0 : i32
    return %c0_i32, %c0_i32_0 : i32, i32
  }
  func.func @transform_16(%arg0: i32) -> (i32, i32) {
    %c0_i32 = arith.constant 0 : i32
    %c0_i32_0 = arith.constant 0 : i32
    %c0_i32_1 = arith.constant 0 : i32
    return %c0_i32, %c0_i32_0 : i32, i32
  }
  func.func @transform_17(%arg0: i32) -> (i32, i32) {
    %c0_i32 = arith.constant 0 : i32
    %c0_i32_0 = arith.constant 0 : i32
    %c0_i32_1 = arith.constant 0 : i32
    return %c0_i32, %c0_i32_0 : i32, i32
  }
}

</mosaic_0001>

<llo_original>
// kernel: gimvi_vae_forward.1
$region0: #{gimvi_vae_forward.1}
  #allocation0 [shape = 'u32[]', space=smem, size = 0x4, offset = 0x4, fixed_abs, tag = 'smem constant byte address 0x4 - core index']
  #allocation1 [shape = 'u32[144,128]{1,0:T(1,128)}', space=vmem, size = 0x12000, scoped, tag = 'internal scratch']
  %s0 = inlined_call_operand.vmem [shape: f32[8,32], index: 0, kind: input, shape index: {}]
  %s1 = inlined_call_operand.vmem [shape: f32[32,1024], index: 1, kind: input, shape index: {}]
  %s2 = inlined_call_operand.vmem [shape: f32[1,1024], index: 2, kind: input, shape index: {}]
  %s3 = inlined_call_operand.vmem [shape: f32[1,1024], index: 3, kind: input, shape index: {}]
  %s4 = inlined_call_operand.vmem [shape: f32[1,1024], index: 4, kind: input, shape index: {}]
  %s5 = inlined_call_operand.vmem [shape: f32[256,40], index: 5, kind: input, shape index: {}]
  %s6 = inlined_call_operand.vmem [shape: f32[1,40], index: 6, kind: input, shape index: {}]
  %s7 = inlined_call_operand.vmem [shape: f32[1,40], index: 7, kind: input, shape index: {}]
  %s8 = inlined_call_operand.vmem [shape: f32[1,40], index: 8, kind: input, shape index: {}]
  %s9 = inlined_call_operand.vmem [shape: f32[10,256], index: 9, kind: input, shape index: {}]
  %s10 = inlined_call_operand.vmem [shape: f32[1,256], index: 10, kind: input, shape index: {}]
  %s11 = inlined_call_operand.vmem [shape: f32[1,256], index: 11, kind: input, shape index: {}]
  %s12 = inlined_call_operand.vmem [shape: f32[1,256], index: 12, kind: input, shape index: {}]
  %s13 = inlined_call_operand.vmem [shape: f32[256,32], index: 13, kind: input, shape index: {}]
  %s14 = inlined_call_operand.vmem [shape: f32[1,32], index: 14, kind: input, shape index: {}]
  %s15 = inlined_call_operand.vmem [shape: f32[8,1024], index: 15, kind: output, shape index: {0}]
  %s16 = inlined_call_operand.vmem [shape: f32[8,40], index: 16, kind: output, shape index: {1}]
  %s17 = inlined_call_operand.vmem [shape: f32[8,32], index: 17, kind: output, shape index: {2}]
  %18 = xla_tuple %s15, %s16, %s17
  %s19 = sld [smem:[#allocation0]]
  $region86: #{gimvi_vae_forward.1} parent=0
    _
  %s21 = ssub.s32 1, %s19
  %s22 = scalar_select 0, %s21, %s19
  // Predicated region
  $region2: #{gimvi_vae_forward.1} parent=0 // pred_check
    _
  $region3: #{gimvi_vae_forward.1} parent=0 // pred_check_branch
    %24 = sbr.rel (0) target = $region5
  $region4: #{gimvi_vae_forward.1} parent=0 // pred_region
    _
  $region5: #{gimvi_vae_forward.1} parent=0 // pred_fallthru
    _
  // Predicated region
  $region6: #{gimvi_vae_forward.1} parent=0 // pred_check
    _
  $region7: #{gimvi_vae_forward.1} parent=0 // pred_check_branch
    %26 = sbr.rel (0) target = $region9
  $region8: #{gimvi_vae_forward.1} parent=0 // pred_region
    _
  $region9: #{gimvi_vae_forward.1} parent=0 // pred_fallthru
    _
  // Predicated region
  $region10: #{gimvi_vae_forward.1} parent=0 // pred_check
    _
  $region11: #{gimvi_vae_forward.1} parent=0 // pred_check_branch
    %28 = sbr.rel (0) target = $region13
  $region12: #{gimvi_vae_forward.1} parent=0 // pred_region
    _
  $region13: #{gimvi_vae_forward.1} parent=0 // pred_fallthru
    _
  // Predicated region
  $region14: #{gimvi_vae_forward.1} parent=0 // pred_check
    _
  $region15: #{gimvi_vae_forward.1} parent=0 // pred_check_branch
    %30 = sbr.rel (0) target = $region17
  $region16: #{gimvi_vae_forward.1} parent=0 // pred_region
    _
  $region17: #{gimvi_vae_forward.1} parent=0 // pred_fallthru
    _
  // Predicated region
  $region18: #{gimvi_vae_forward.1} parent=0 // pred_check
    _
  $region19: #{gimvi_vae_forward.1} parent=0 // pred_check_branch
    %32 = sbr.rel (0) target = $region21
  $region20: #{gimvi_vae_forward.1} parent=0 // pred_region
    _
  $region21: #{gimvi_vae_forward.1} parent=0 // pred_fallthru
    _
  // Predicated region
  $region22: #{gimvi_vae_forward.1} parent=0 // pred_check
    _
  $region23: #{gimvi_vae_forward.1} parent=0 // pred_check_branch
    %34 = sbr.rel (0) target = $region25
  $region24: #{gimvi_vae_forward.1} parent=0 // pred_region
    _
  $region25: #{gimvi_vae_forward.1} parent=0 // pred_fallthru
    _
  // Predicated region
  $region26: #{gimvi_vae_forward.1} parent=0 // pred_check
    _
  $region27: #{gimvi_vae_forward.1} parent=0 // pred_check_branch
    %36 = sbr.rel (0) target = $region29
  $region28: #{gimvi_vae_forward.1} parent=0 // pred_region
    _
  $region29: #{gimvi_vae_forward.1} parent=0 // pred_fallthru
    _
  // Predicated region
  $region30: #{gimvi_vae_forward.1} parent=0 // pred_check
    _
  $region31: #{gimvi_vae_forward.1} parent=0 // pred_check_branch
    %38 = sbr.rel (0) target = $region33
  $region32: #{gimvi_vae_forward.1} parent=0 // pred_region
    _
  $region33: #{gimvi_vae_forward.1} parent=0 // pred_fallthru
    _
  // Predicated region
  $region34: #{gimvi_vae_forward.1} parent=0 // pred_check
    _
  $region35: #{gimvi_vae_forward.1} parent=0 // pred_check_branch
    %40 = sbr.rel (0) target = $region37
  $region36: #{gimvi_vae_forward.1} parent=0 // pred_region
    _
  $region37: #{gimvi_vae_forward.1} parent=0 // pred_fallthru
    _
  // Predicated region
  $region38: #{gimvi_vae_forward.1} parent=0 // pred_check
    _
  $region39: #{gimvi_vae_forward.1} parent=0 // pred_check_branch
    %42 = sbr.rel (0) target = $region41
  $region40: #{gimvi_vae_forward.1} parent=0 // pred_region
    _
  $region41: #{gimvi_vae_forward.1} parent=0 // pred_fallthru
    _
  // Predicated region
  $region42: #{gimvi_vae_forward.1} parent=0 // pred_check
    _
  $region43: #{gimvi_vae_forward.1} parent=0 // pred_check_branch
    %44 = sbr.rel (0) target = $region45
  $region44: #{gimvi_vae_forward.1} parent=0 // pred_region
    _
  $region45: #{gimvi_vae_forward.1} parent=0 // pred_fallthru
    _
  // Predicated region
  $region46: #{gimvi_vae_forward.1} parent=0 // pred_check
    _
  $region47: #{gimvi_vae_forward.1} parent=0 // pred_check_branch
    %46 = sbr.rel (0) target = $region49
  $region48: #{gimvi_vae_forward.1} parent=0 // pred_region
    _
  $region49: #{gimvi_vae_forward.1} parent=0 // pred_fallthru
    _
  // Predicated region
  $region50: #{gimvi_vae_forward.1} parent=0 // pred_check
    _
  $region51: #{gimvi_vae_forward.1} parent=0 // pred_check_branch
    %48 = sbr.rel (0) target = $region53
  $region52: #{gimvi_vae_forward.1} parent=0 // pred_region
    _
  $region53: #{gimvi_vae_forward.1} parent=0 // pred_fallthru
    _
  // Predicated region
  $region54: #{gimvi_vae_forward.1} parent=0 // pred_check
    _
  $region55: #{gimvi_vae_forward.1} parent=0 // pred_check_branch
    %50 = sbr.rel (0) target = $region57
  $region56: #{gimvi_vae_forward.1} parent=0 // pred_region
    _
  $region57: #{gimvi_vae_forward.1} parent=0 // pred_fallthru
    _
  // Predicated region
  $region58: #{gimvi_vae_forward.1} parent=0 // pred_check
    _
  $region59: #{gimvi_vae_forward.1} parent=0 // pred_check_branch
    %52 = sbr.rel (0) target = $region61
  $region60: #{gimvi_vae_forward.1} parent=0 // pred_region
    _
  $region61: #{gimvi_vae_forward.1} parent=0 // pred_fallthru
    _
  %v53 = vld [vmem:[%s0] sm:$0xff]
  %v54 = vld [vmem:[%s1] sm:$0xff]
  %v55 = vld [vmem:[%s1 + $0x8] sm:$0xff]
  %v56 = vld [vmem:[%s1 + $0x10] sm:$0xff]
  %v57 = vld [vmem:[%s1 + $0x18] sm:$0xff]
  %v58 = vld [vmem:[%s1 + $0x20] sm:$0xff]
  %v59 = vld [vmem:[%s1 + $0x28] sm:$0xff]
  %v60 = vld [vmem:[%s1 + $0x30] sm:$0xff]
  %v61 = vld [vmem:[%s1 + $0x38] sm:$0xff]
  %v62 = vld [vmem:[%s1 + $0x40] sm:$0xff]
  %v63 = vld [vmem:[%s1 + $0x48] sm:$0xff]
  %v64 = vld [vmem:[%s1 + $0x50] sm:$0xff]
  %v65 = vld [vmem:[%s1 + $0x58] sm:$0xff]
  %v66 = vld [vmem:[%s1 + $0x60] sm:$0xff]
  %v67 = vld [vmem:[%s1 + $0x68] sm:$0xff]
  %v68 = vld [vmem:[%s1 + $0x70] sm:$0xff]
  %v69 = vld [vmem:[%s1 + $0x78] sm:$0xff]
  %v70 = vld [vmem:[%s1 + $0x80] sm:$0xff]
  %v71 = vld [vmem:[%s1 + $0x88] sm:$0xff]
  %v72 = vld [vmem:[%s1 + $0x90] sm:$0xff]
  %v73 = vld [vmem:[%s1 + $0x98] sm:$0xff]
  %v74 = vld [vmem:[%s1 + $0xa0] sm:$0xff]
  %v75 = vld [vmem:[%s1 + $0xa8] sm:$0xff]
  %v76 = vld [vmem:[%s1 + $0xb0] sm:$0xff]
  %v77 = vld [vmem:[%s1 + $0xb8] sm:$0xff]
  %v78 = vld [vmem:[%s1 + $0xc0] sm:$0xff]
  %v79 = vld [vmem:[%s1 + $0xc8] sm:$0xff]
  %v80 = vld [vmem:[%s1 + $0xd0] sm:$0xff]
  %v81 = vld [vmem:[%s1 + $0xd8] sm:$0xff]
  %v82 = vld [vmem:[%s1 + $0xe0] sm:$0xff]
  %v83 = vld [vmem:[%s1 + $0xe8] sm:$0xff]
  %v84 = vld [vmem:[%s1 + $0xf0] sm:$0xff]
  %v85 = vld [vmem:[%s1 + $0xf8] sm:$0xff]
  %v86 = vld [vmem:[%s2] sm:$0xff]
  %v88 = vlaneseq
  %v89 = vshrl.u32 %v88, 7
  %v90 = vsub.s32 0, %v89
  %v91 = vrot.slane %v86, %v90
  %v92 = vlaneseq
  %v93 = vshrl.u32 %v92, 7
  %v94 = vsub.s32 1, %v93
  %v95 = vrot.slane %v86, %v94
  %v96 = vlaneseq
  %v97 = vshrl.u32 %v96, 7
  %v98 = vsub.s32 2, %v97
  %v99 = vrot.slane %v86, %v98
  %v100 = vlaneseq
  %v101 = vshrl.u32 %v100, 7
  %v102 = vsub.s32 3, %v101
  %v103 = vrot.slane %v86, %v102
  %v104 = vlaneseq
  %v105 = vshrl.u32 %v104, 7
  %v106 = vsub.s32 4, %v105
  %v107 = vrot.slane %v86, %v106
  %v108 = vlaneseq
  %v109 = vshrl.u32 %v108, 7
  %v110 = vsub.s32 5, %v109
  %v111 = vrot.slane %v86, %v110
  %v112 = vlaneseq
  %v113 = vshrl.u32 %v112, 7
  %v114 = vsub.s32 6, %v113
  %v115 = vrot.slane %v86, %v114
  %v116 = vlaneseq
  %v117 = vshrl.u32 %v116, 7
  %v118 = vsub.s32 7, %v117
  %v119 = vrot.slane %v86, %v118
  %vm128 = vcmask 261120
  %v130 = vsel %vm128, %v53, 0
  %132 = vmatprep.subr.mxu0 0.0
  %133 = vmatpush1.msra.mxu0 0.0
  %134 = vmatprep.subr.mxu0 0.0
  %135 = vmatpush1.msra.mxu0 0.0
  %136 = vmatprep.subr.mxu0 0.0
  %137 = vmatpush1.msra.mxu0 0.0
  %138 = vmatprep.subr.mxu0 0.0
  %139 = vmatpush1.msra.mxu0 0.0
  %140 = vmatprep.subr.mxu0 0.0
  %141 = vmatpush1.msra.mxu0 0.0
  %142 = vmatprep.subr.mxu0 0.0
  %143 = vmatpush1.msra.mxu0 0.0
  %144 = vmatprep.subr.mxu0 0.0
  %145 = vmatpush1.msra.mxu0 0.0
  %146 = vmatprep.subr.mxu0 0.0
  %147 = vmatpush1.msra.mxu0 0.0
  %148 = vmatprep.subr.mxu0 0.0
  %149 = vmatpush1.msra.mxu0 0.0
  %150 = vmatprep.subr.mxu0 0.0
  %151 = vmatpush1.msra.mxu0 0.0
  %152 = vmatprep.subr.mxu0 0.0
  %153 = vmatpush1.msra.mxu0 0.0
  %154 = vmatprep.subr.mxu0 0.0
  %155 = vmatpush1.msra.mxu0 0.0
  %156 = vmatprep.subr.mxu0 %v79
  %157 = vmatpush1.msra.mxu0 %v78
  %158 = vmatprep.subr.mxu0 %v71
  %159 = vmatpush1.msra.mxu0 %v70
  %160 = vmatprep.subr.mxu0 %v63
  %161 = vmatpush1.msra.mxu0 %v62
  %162 = vmatprep.subr.mxu0 %v55
  %163 = vmatpush1.msra.mxu0 %v54
  %164 = vmatprep.subr.mxu0 0.0
  %165 = vmatpush2.msra.mxu0 0.0
  %166 = vmatprep.subr.mxu0 0.0
  %167 = vmatpush2.msra.mxu0 0.0
  %168 = vmatprep.subr.mxu0 0.0
  %169 = vmatpush2.msra.mxu0 0.0
  %170 = vmatprep.subr.mxu0 0.0
  %171 = vmatpush2.msra.mxu0 0.0
  %172 = vmatprep.subr.mxu0 0.0
  %173 = vmatpush2.msra.mxu0 0.0
  %174 = vmatprep.subr.mxu0 0.0
  %175 = vmatpush2.msra.mxu0 0.0
  %176 = vmatprep.subr.mxu0 0.0
  %177 = vmatpush2.msra.mxu0 0.0
  %178 = vmatprep.subr.mxu0 0.0
  %179 = vmatpush2.msra.mxu0 0.0
  %180 = vmatprep.subr.mxu0 0.0
  %181 = vmatpush2.msra.mxu0 0.0
  %182 = vmatprep.subr.mxu0 0.0
  %183 = vmatpush2.msra.mxu0 0.0
  %184 = vmatprep.subr.mxu0 0.0
  %185 = vmatpush2.msra.mxu0 0.0
  %186 = vmatprep.subr.mxu0 0.0
  %187 = vmatpush2.msra.mxu0 0.0
  %188 = vmatprep.subr.mxu0 0.0
  %189 = vmatpush2.msra.mxu0 0.0
  %190 = vmatprep.subr.mxu0 0.0
  %191 = vmatpush2.msra.mxu0 0.0
  %192 = vmatprep.subr.mxu0 0.0
  %193 = vmatpush2.msra.mxu0 0.0
  %194 = vmatprep.subr.mxu0 0.0
  %195 = vmatpush2.msra.mxu0 0.0
  %196 = vmatprep.mubr.f32.mxu0 0.0
  %197 = vmatmul.mubr.f32.gmra.mxu0 %v130
  %v198 = vpop.f32.mrf.mxu0
  %v199 = vadd.f32 %v91, %v198
  %v200 = vpop.f32.mrf.mxu0
  %v201 = vadd.f32 %v95, %v200
  %202 = vdwg.mxu0
  %203 = vmatprep.subr.mxu0 0.0
  %204 = vmatpush1.msra.mxu0 0.0
  %205 = vmatprep.subr.mxu0 0.0
  %206 = vmatpush1.msra.mxu0 0.0
  %207 = vmatprep.subr.mxu0 0.0
  %208 = vmatpush1.msra.mxu0 0.0
  %209 = vmatprep.subr.mxu0 0.0
  %210 = vmatpush1.msra.mxu0 0.0
  %211 = vmatprep.subr.mxu0 0.0
  %212 = vmatpush1.msra.mxu0 0.0
  %213 = vmatprep.subr.mxu0 0.0
  %214 = vmatpush1.msra.mxu0 0.0
  %215 = vmatprep.subr.mxu0 0.0
  %216 = vmatpush1.msra.mxu0 0.0
  %217 = vmatprep.subr.mxu0 0.0
  %218 = vmatpush1.msra.mxu0 0.0
  %219 = vmatprep.subr.mxu0 0.0
  %220 = vmatpush1.msra.mxu0 0.0
  %221 = vmatprep.subr.mxu0 0.0
  %222 = vmatpush1.msra.mxu0 0.0
  %223 = vmatprep.subr.mxu0 0.0
  %224 = vmatpush1.msra.mxu0 0.0
  %225 = vmatprep.subr.mxu0 0.0
  %226 = vmatpush1.msra.mxu0 0.0
  %227 = vmatprep.subr.mxu0 %v81
  %228 = vmatpush1.msra.mxu0 %v80
  %229 = vmatprep.subr.mxu0 %v73
  %230 = vmatpush1.msra.mxu0 %v72
  %231 = vmatprep.subr.mxu0 %v65
  %232 = vmatpush1.msra.mxu0 %v64
  %233 = vmatprep.subr.mxu0 %v57
  %234 = vmatpush1.msra.mxu0 %v56
  %235 = vmatprep.subr.mxu0 0.0
  %236 = vmatpush2.msra.mxu0 0.0
  %237 = vmatprep.subr.mxu0 0.0
  %238 = vmatpush2.msra.mxu0 0.0
  %239 = vmatprep.subr.mxu0 0.0
  %240 = vmatpush2.msra.mxu0 0.0
  %241 = vmatprep.subr.mxu0 0.0
  %242 = vmatpush2.msra.mxu0 0.0
  %243 = vmatprep.subr.mxu0 0.0
  %244 = vmatpush2.msra.mxu0 0.0
  %245 = vmatprep.subr.mxu0 0.0
  %246 = vmatpush2.msra.mxu0 0.0
  %247 = vmatprep.subr.mxu0 0.0
  %248 = vmatpush2.msra.mxu0 0.0
  %249 = vmatprep.subr.mxu0 0.0
  %250 = vmatpush2.msra.mxu0 0.0
  %251 = vmatprep.subr.mxu0 0.0
  %252 = vmatpush2.msra.mxu0 0.0
  %253 = vmatprep.subr.mxu0 0.0
  %254 = vmatpush2.msra.mxu0 0.0
  %255 = vmatprep.subr.mxu0 0.0
  %256 = vmatpush2.msra.mxu0 0.0
  %257 = vmatprep.subr.mxu0 0.0
  %258 = vmatpush2.msra.mxu0 0.0
  %259 = vmatprep.subr.mxu0 0.0
  %260 = vmatpush2.msra.mxu0 0.0
  %261 = vmatprep.subr.mxu0 0.0
  %262 = vmatpush2.msra.mxu0 0.0
  %263 = vmatprep.subr.mxu0 0.0
  %264 = vmatpush2.msra.mxu0 0.0
  %265 = vmatprep.subr.mxu0 0.0
  %266 = vmatpush2.msra.mxu0 0.0
  %267 = vmatprep.mubr.f32.mxu0 0.0
  %268 = vmatmul.mubr.f32.gmra.mxu0 %v130
  %v269 = vpop.f32.mrf.mxu0
  %v270 = vadd.f32 %v99, %v269
  %v271 = vpop.f32.mrf.mxu0
  %v272 = vadd.f32 %v103, %v271
  %273 = vdwg.mxu0
  %274 = vmatprep.subr.mxu0 0.0
  %275 = vmatpush1.msra.mxu0 0.0
  %276 = vmatprep.subr.mxu0 0.0
  %277 = vmatpush1.msra.mxu0 0.0
  %278 = vmatprep.subr.mxu0 0.0
  %279 = vmatpush1.msra.mxu0 0.0
  %280 = vmatprep.subr.mxu0 0.0
  %281 = vmatpush1.msra.mxu0 0.0
  %282 = vmatprep.subr.mxu0 0.0
  %283 = vmatpush1.msra.mxu0 0.0
  %284 = vmatprep.subr.mxu0 0.0
  %285 = vmatpush1.msra.mxu0 0.0
  %286 = vmatprep.subr.mxu0 0.0
  %287 = vmatpush1.msra.mxu0 0.0
  %288 = vmatprep.subr.mxu0 0.0
  %289 = vmatpush1.msra.mxu0 0.0
  %290 = vmatprep.subr.mxu0 0.0
  %291 = vmatpush1.msra.mxu0 0.0
  %292 = vmatprep.subr.mxu0 0.0
  %293 = vmatpush1.msra.mxu0 0.0
  %294 = vmatprep.subr.mxu0 0.0
  %295 = vmatpush1.msra.mxu0 0.0
  %296 = vmatprep.subr.mxu0 0.0
  %297 = vmatpush1.msra.mxu0 0.0
  %298 = vmatprep.subr.mxu0 %v83
  %299 = vmatpush1.msra.mxu0 %v82
  %300 = vmatprep.subr.mxu0 %v75
  %301 = vmatpush1.msra.mxu0 %v74
  %302 = vmatprep.subr.mxu0 %v67
  %303 = vmatpush1.msra.mxu0 %v66
  %304 = vmatprep.subr.mxu0 %v59
  %305 = vmatpush1.msra.mxu0 %v58
  %306 = vmatprep.subr.mxu0 0.0
  %307 = vmatpush2.msra.mxu0 0.0
  %308 = vmatprep.subr.mxu0 0.0
  %309 = vmatpush2.msra.mxu0 0.0
  %310 = vmatprep.subr.mxu0 0.0
  %311 = vmatpush2.msra.mxu0 0.0
  %312 = vmatprep.subr.mxu0 0.0
  %313 = vmatpush2.msra.mxu0 0.0
  %314 = vmatprep.subr.mxu0 0.0
  %315 = vmatpush2.msra.mxu0 0.0
  %316 = vmatprep.subr.mxu0 0.0
  %317 = vmatpush2.msra.mxu0 0.0
  %318 = vmatprep.subr.mxu0 0.0
  %319 = vmatpush2.msra.mxu0 0.0
  %320 = vmatprep.subr.mxu0 0.0
  %321 = vmatpush2.msra.mxu0 0.0
  %322 = vmatprep.subr.mxu0 0.0
  %323 = vmatpush2.msra.mxu0 0.0
  %324 = vmatprep.subr.mxu0 0.0
  %325 = vmatpush2.msra.mxu0 0.0
  %326 = vmatprep.subr.mxu0 0.0
  %327 = vmatpush2.msra.mxu0 0.0
  %328 = vmatprep.subr.mxu0 0.0
  %329 = vmatpush2.msra.mxu0 0.0
  %330 = vmatprep.subr.mxu0 0.0
  %331 = vmatpush2.msra.mxu0 0.0
  %332 = vmatprep.subr.mxu0 0.0
  %333 = vmatpush2.msra.mxu0 0.0
  %334 = vmatprep.subr.mxu0 0.0
  %335 = vmatpush2.msra.mxu0 0.0
  %336 = vmatprep.subr.mxu0 0.0
  %337 = vmatpush2.msra.mxu0 0.0
  %338 = vmatprep.mubr.f32.mxu0 0.0
  %339 = vmatmul.mubr.f32.gmra.mxu0 %v130
  %v340 = vpop.f32.mrf.mxu0
  %v341 = vadd.f32 %v107, %v340
  %v342 = vpop.f32.mrf.mxu0
  %v343 = vadd.f32 %v111, %v342
  %344 = vdwg.mxu0
  %345 = vmatprep.subr.mxu0 0.0
  %346 = vmatpush1.msra.mxu0 0.0
  %347 = vmatprep.subr.mxu0 0.0
  %348 = vmatpush1.msra.mxu0 0.0
  %349 = vmatprep.subr.mxu0 0.0
  %350 = vmatpush1.msra.mxu0 0.0
  %351 = vmatprep.subr.mxu0 0.0
  %352 = vmatpush1.msra.mxu0 0.0
  %353 = vmatprep.subr.mxu0 0.0
  %354 = vmatpush1.msra.mxu0 0.0
  %355 = vmatprep.subr.mxu0 0.0
  %356 = vmatpush1.msra.mxu0 0.0
  %357 = vmatprep.subr.mxu0 0.0
  %358 = vmatpush1.msra.mxu0 0.0
  %359 = vmatprep.subr.mxu0 0.0
  %360 = vmatpush1.msra.mxu0 0.0
  %361 = vmatprep.subr.mxu0 0.0
  %362 = vmatpush1.msra.mxu0 0.0
  %363 = vmatprep.subr.mxu0 0.0
  %364 = vmatpush1.msra.mxu0 0.0
  %365 = vmatprep.subr.mxu0 0.0
  %366 = vmatpush1.msra.mxu0 0.0
  %367 = vmatprep.subr.mxu0 0.0
  %368 = vmatpush1.msra.mxu0 0.0
  %369 = vmatprep.subr.mxu0 %v85
  %370 = vmatpush1.msra.mxu0 %v84
  %371 = vmatprep.subr.mxu0 %v77
  %372 = vmatpush1.msra.mxu0 %v76
  %373 = vmatprep.subr.mxu0 %v69
  %374 = vmatpush1.msra.mxu0 %v68
  %375 = vmatprep.subr.mxu0 %v61
  %376 = vmatpush1.msra.mxu0 %v60
  %377 = vmatprep.subr.mxu0 0.0
  %378 = vmatpush2.msra.mxu0 0.0
  %379 = vmatprep.subr.mxu0 0.0
  %380 = vmatpush2.msra.mxu0 0.0
  %381 = vmatprep.subr.mxu0 0.0
  %382 = vmatpush2.msra.mxu0 0.0
  %383 = vmatprep.subr.mxu0 0.0
  %384 = vmatpush2.msra.mxu0 0.0
  %385 = vmatprep.subr.mxu0 0.0
  %386 = vmatpush2.msra.mxu0 0.0
  %387 = vmatprep.subr.mxu0 0.0
  %388 = vmatpush2.msra.mxu0 0.0
  %389 = vmatprep.subr.mxu0 0.0
  %390 = vmatpush2.msra.mxu0 0.0
  %391 = vmatprep.subr.mxu0 0.0
  %392 = vmatpush2.msra.mxu0 0.0
  %393 = vmatprep.subr.mxu0 0.0
  %394 = vmatpush2.msra.mxu0 0.0
  %395 = vmatprep.subr.mxu0 0.0
  %396 = vmatpush2.msra.mxu0 0.0
  %397 = vmatprep.subr.mxu0 0.0
  %398 = vmatpush2.msra.mxu0 0.0
  %399 = vmatprep.subr.mxu0 0.0
  %400 = vmatpush2.msra.mxu0 0.0
  %401 = vmatprep.subr.mxu0 0.0
  %402 = vmatpush2.msra.mxu0 0.0
  %403 = vmatprep.subr.mxu0 0.0
  %404 = vmatpush2.msra.mxu0 0.0
  %405 = vmatprep.subr.mxu0 0.0
  %406 = vmatpush2.msra.mxu0 0.0
  %407 = vmatprep.subr.mxu0 0.0
  %408 = vmatpush2.msra.mxu0 0.0
  %409 = vmatprep.mubr.f32.mxu0 0.0
  %410 = vmatmul.mubr.f32.gmra.mxu0 %v130
  %v411 = vpop.f32.mrf.mxu0
  %v412 = vadd.f32 %v115, %v411
  %v413 = vpop.f32.mrf.mxu0
  %v414 = vadd.f32 %v119, %v413
  %415 = vdwg.mxu0
  %v416 = vld [vmem:[%s3] sm:$0x3]
  %v417 = vld [vmem:[%s4] sm:$0x3]
  %v418 = vadd.f32 %v199, %v201
  %419 = vadd.xlane.f32.xlu0 %v418
  %v420 = vpop.xlane.xlu0 %419
  %v421 = vrcp.pop 256.0
  %v422 = vmul.f32 %v420, %v421
  %v423 = vsub.f32 %v199, %v422
  %v424 = vsub.f32 %v201, %v422
  %v425 = vmul.f32 %v423, %v423
  %v426 = vmul.f32 %v424, %v424
  %v427 = vadd.f32 %v425, %v426
  %428 = vadd.xlane.f32.xlu0 %v427
  %v429 = vpop.xlane.xlu0 %428
  %v430 = vmul.f32 %v429, %v421
  %v431 = vadd.f32 %v430, 1e-05
  %v432 = vrsqrt.pop %v431
  %v433 = vmul.f32 %v423, %v432
  %v434 = vmul.f32 %v424, %v432
  %v436 = vlaneseq
  %v437 = vshrl.u32 %v436, 7
  %v438 = vsub.s32 0, %v437
  %v439 = vrot.slane %v416, %v438
  %v440 = vlaneseq
  %v441 = vshrl.u32 %v440, 7
  %v442 = vsub.s32 1, %v441
  %v443 = vrot.slane %v416, %v442
  %v446 = vmul.f32 %v433, %v439
  %v447 = vmul.f32 %v434, %v443
  %v449 = vlaneseq
  %v450 = vshrl.u32 %v449, 7
  %v451 = vsub.s32 0, %v450
  %v452 = vrot.slane %v417, %v451
  %v453 = vlaneseq
  %v454 = vshrl.u32 %v453, 7
  %v455 = vsub.s32 1, %v454
  %v456 = vrot.slane %v417, %v455
  %v459 = vadd.f32 %v446, %v452
  %v460 = vadd.f32 %v447, %v456
  %v461 = vmax.f32 %v459, 0.0
  %v462 = vmax.f32 %v460, 0.0
  %463 = vst [vmem:[%s15] sm:$0xff] %v461
  %464 = vst [vmem:[%s15 + $0x8] sm:$0xff] %v462
  %v465 = vld [vmem:[%s3 + $0x2] sm:$0x3]
  %v466 = vld [vmem:[%s4 + $0x2] sm:$0x3]
  %v467 = vadd.f32 %v270, %v272
  %468 = vadd.xlane.f32.xlu0 %v467
  %v469 = vpop.xlane.xlu0 %468
  %v470 = vmul.f32 %v469, %v421
  %v471 = vsub.f32 %v270, %v470
  %v472 = vsub.f32 %v272, %v470
  %v473 = vmul.f32 %v471, %v471
  %v474 = vmul.f32 %v472, %v472
  %v475 = vadd.f32 %v473, %v474
  %476 = vadd.xlane.f32.xlu0 %v475
  %v477 = vpop.xlane.xlu0 %476
  %v478 = vmul.f32 %v477, %v421
  %v479 = vadd.f32 %v478, 1e-05
  %v480 = vrsqrt.pop %v479
  %v481 = vmul.f32 %v471, %v480
  %v482 = vmul.f32 %v472, %v480
  %v484 = vlaneseq
  %v485 = vshrl.u32 %v484, 7
  %v486 = vsub.s32 0, %v485
  %v487 = vrot.slane %v465, %v486
  %v488 = vlaneseq
  %v489 = vshrl.u32 %v488, 7
  %v490 = vsub.s32 1, %v489
  %v491 = vrot.slane %v465, %v490
  %v494 = vmul.f32 %v481, %v487
  %v495 = vmul.f32 %v482, %v491
  %v497 = vlaneseq
  %v498 = vshrl.u32 %v497, 7
  %v499 = vsub.s32 0, %v498
  %v500 = vrot.slane %v466, %v499
  %v501 = vlaneseq
  %v502 = vshrl.u32 %v501, 7
  %v503 = vsub.s32 1, %v502
  %v504 = vrot.slane %v466, %v503
  %v507 = vadd.f32 %v494, %v500
  %v508 = vadd.f32 %v495, %v504
  %v509 = vmax.f32 %v507, 0.0
  %v510 = vmax.f32 %v508, 0.0
  %511 = vst [vmem:[%s15 + $0x10] sm:$0xff] %v509
  %512 = vst [vmem:[%s15 + $0x18] sm:$0xff] %v510
  %v513 = vld [vmem:[%s3 + $0x4] sm:$0x3]
  %v514 = vld [vmem:[%s4 + $0x4] sm:$0x3]
  %v515 = vadd.f32 %v341, %v343
  %516 = vadd.xlane.f32.xlu0 %v515
  %v517 = vpop.xlane.xlu0 %516
  %v518 = vmul.f32 %v517, %v421
  %v519 = vsub.f32 %v341, %v518
  %v520 = vsub.f32 %v343, %v518
  %v521 = vmul.f32 %v519, %v519
  %v522 = vmul.f32 %v520, %v520
  %v523 = vadd.f32 %v521, %v522
  %524 = vadd.xlane.f32.xlu0 %v523
  %v525 = vpop.xlane.xlu0 %524
  %v526 = vmul.f32 %v525, %v421
  %v527 = vadd.f32 %v526, 1e-05
  %v528 = vrsqrt.pop %v527
  %v529 = vmul.f32 %v519, %v528
  %v530 = vmul.f32 %v520, %v528
  %v532 = vlaneseq
  %v533 = vshrl.u32 %v532, 7
  %v534 = vsub.s32 0, %v533
  %v535 = vrot.slane %v513, %v534
  %v536 = vlaneseq
  %v537 = vshrl.u32 %v536, 7
  %v538 = vsub.s32 1, %v537
  %v539 = vrot.slane %v513, %v538
  %v542 = vmul.f32 %v529, %v535
  %v543 = vmul.f32 %v530, %v539
  %v545 = vlaneseq
  %v546 = vshrl.u32 %v545, 7
  %v547 = vsub.s32 0, %v546
  %v548 = vrot.slane %v514, %v547
  %v549 = vlaneseq
  %v550 = vshrl.u32 %v549, 7
  %v551 = vsub.s32 1, %v550
  %v552 = vrot.slane %v514, %v551
  %v555 = vadd.f32 %v542, %v548
  %v556 = vadd.f32 %v543, %v552
  %v557 = vmax.f32 %v555, 0.0
  %v558 = vmax.f32 %v556, 0.0
  %559 = vst [vmem:[%s15 + $0x20] sm:$0xff] %v557
  %560 = vst [vmem:[%s15 + $0x28] sm:$0xff] %v558
  %v561 = vld [vmem:[%s3 + $0x6] sm:$0x3]
  %v562 = vld [vmem:[%s4 + $0x6] sm:$0x3]
  %v563 = vadd.f32 %v412, %v414
  %564 = vadd.xlane.f32.xlu0 %v563
  %v565 = vpop.xlane.xlu0 %564
  %v566 = vmul.f32 %v565, %v421
  %v567 = vsub.f32 %v412, %v566
  %v568 = vsub.f32 %v414, %v566
  %v569 = vmul.f32 %v567, %v567
  %v570 = vmul.f32 %v568, %v568
  %v571 = vadd.f32 %v569, %v570
  %572 = vadd.xlane.f32.xlu0 %v571
  %v573 = vpop.xlane.xlu0 %572
  %v574 = vmul.f32 %v573, %v421
  %v575 = vadd.f32 %v574, 1e-05
  %v576 = vrsqrt.pop %v575
  %v577 = vmul.f32 %v567, %v576
  %v578 = vmul.f32 %v568, %v576
  %v580 = vlaneseq
  %v581 = vshrl.u32 %v580, 7
  %v582 = vsub.s32 0, %v581
  %v583 = vrot.slane %v561, %v582
  %v584 = vlaneseq
  %v585 = vshrl.u32 %v584, 7
  %v586 = vsub.s32 1, %v585
  %v587 = vrot.slane %v561, %v586
  %v590 = vmul.f32 %v577, %v583
  %v591 = vmul.f32 %v578, %v587
  %v593 = vlaneseq
  %v594 = vshrl.u32 %v593, 7
  %v595 = vsub.s32 0, %v594
  %v596 = vrot.slane %v562, %v595
  %v597 = vlaneseq
  %v598 = vshrl.u32 %v597, 7
  %v599 = vsub.s32 1, %v598
  %v600 = vrot.slane %v562, %v599
  %v603 = vadd.f32 %v590, %v596
  %v604 = vadd.f32 %v591, %v600
  %v605 = vmax.f32 %v603, 0.0
  %v606 = vmax.f32 %v604, 0.0
  %607 = vst [vmem:[%s15 + $0x30] sm:$0xff] %v605
  %608 = vst [vmem:[%s15 + $0x38] sm:$0xff] %v606
  %v609 = vld [vmem:[%s5] sm:$0xff]
  %v610 = vld [vmem:[%s5 + $0x8] sm:$0xff]
  %v611 = vld [vmem:[%s5 + $0x10] sm:$0xff]
  %v612 = vld [vmem:[%s5 + $0x18] sm:$0xff]
  %v613 = vld [vmem:[%s5 + $0x20] sm:$0xff]
  %v614 = vld [vmem:[%s5 + $0x28] sm:$0xff]
  %v615 = vld [vmem:[%s5 + $0x30] sm:$0xff]
  %v616 = vld [vmem:[%s5 + $0x38] sm:$0xff]
  %v617 = vld [vmem:[%s5 + $0x40] sm:$0xff]
  %v618 = vld [vmem:[%s5 + $0x48] sm:$0xff]
  %v619 = vld [vmem:[%s5 + $0x50] sm:$0xff]
  %v620 = vld [vmem:[%s5 + $0x58] sm:$0xff]
  %v621 = vld [vmem:[%s5 + $0x60] sm:$0xff]
  %v622 = vld [vmem:[%s5 + $0x68] sm:$0xff]
  %v623 = vld [vmem:[%s5 + $0x70] sm:$0xff]
  %v624 = vld [vmem:[%s5 + $0x78] sm:$0xff]
  %v625 = vld [vmem:[%s5 + $0x80] sm:$0xff]
  %v626 = vld [vmem:[%s5 + $0x88] sm:$0xff]
  %v627 = vld [vmem:[%s5 + $0x90] sm:$0xff]
  %v628 = vld [vmem:[%s5 + $0x98] sm:$0xff]
  %v629 = vld [vmem:[%s5 + $0xa0] sm:$0xff]
  %v630 = vld [vmem:[%s5 + $0xa8] sm:$0xff]
  %v631 = vld [vmem:[%s5 + $0xb0] sm:$0xff]
  %v632 = vld [vmem:[%s5 + $0xb8] sm:$0xff]
  %v633 = vld [vmem:[%s5 + $0xc0] sm:$0xff]
  %v634 = vld [vmem:[%s5 + $0xc8] sm:$0xff]
  %v635 = vld [vmem:[%s5 + $0xd0] sm:$0xff]
  %v636 = vld [vmem:[%s5 + $0xd8] sm:$0xff]
  %v637 = vld [vmem:[%s5 + $0xe0] sm:$0xff]
  %v638 = vld [vmem:[%s5 + $0xe8] sm:$0xff]
  %v639 = vld [vmem:[%s5 + $0xf0] sm:$0xff]
  %v640 = vld [vmem:[%s5 + $0xf8] sm:$0xff]
  %v641 = vld [vmem:[%s6] sm:$0x1]
  %v643 = vlaneseq
  %v644 = vshrl.u32 %v643, 7
  %v645 = vsub.s32 0, %v644
  %v646 = vrot.slane %v641, %v645
  %648 = vmatprep.subr.mxu0 0.0
  %649 = vmatpush1.msra.mxu0 %v624
  %650 = vmatprep.subr.mxu0 0.0
  %651 = vmatpush1.msra.mxu0 %v623
  %652 = vmatprep.subr.mxu0 0.0
  %653 = vmatpush1.msra.mxu0 %v622
  %654 = vmatprep.subr.mxu0 0.0
  %655 = vmatpush1.msra.mxu0 %v621
  %656 = vmatprep.subr.mxu0 0.0
  %657 = vmatpush1.msra.mxu0 %v620
  %658 = vmatprep.subr.mxu0 0.0
  %659 = vmatpush1.msra.mxu0 %v619
  %660 = vmatprep.subr.mxu0 0.0
  %661 = vmatpush1.msra.mxu0 %v618
  %662 = vmatprep.subr.mxu0 0.0
  %663 = vmatpush1.msra.mxu0 %v617
  %664 = vmatprep.subr.mxu0 0.0
  %665 = vmatpush1.msra.mxu0 %v616
  %666 = vmatprep.subr.mxu0 0.0
  %667 = vmatpush1.msra.mxu0 %v615
  %668 = vmatprep.subr.mxu0 0.0
  %669 = vmatpush1.msra.mxu0 %v614
  %670 = vmatprep.subr.mxu0 0.0
  %671 = vmatpush1.msra.mxu0 %v613
  %672 = vmatprep.subr.mxu0 0.0
  %673 = vmatpush1.msra.mxu0 %v612
  %674 = vmatprep.subr.mxu0 0.0
  %675 = vmatpush1.msra.mxu0 %v611
  %676 = vmatprep.subr.mxu0 0.0
  %677 = vmatpush1.msra.mxu0 %v610
  %678 = vmatprep.subr.mxu0 0.0
  %679 = vmatpush1.msra.mxu0 %v609
  %680 = vmatprep.subr.mxu0 0.0
  %681 = vmatpush2.msra.mxu0 %v640
  %682 = vmatprep.subr.mxu0 0.0
  %683 = vmatpush2.msra.mxu0 %v639
  %684 = vmatprep.subr.mxu0 0.0
  %685 = vmatpush2.msra.mxu0 %v638
  %686 = vmatprep.subr.mxu0 0.0
  %687 = vmatpush2.msra.mxu0 %v637
  %688 = vmatprep.subr.mxu0 0.0
  %689 = vmatpush2.msra.mxu0 %v636
  %690 = vmatprep.subr.mxu0 0.0
  %691 = vmatpush2.msra.mxu0 %v635
  %692 = vmatprep.subr.mxu0 0.0
  %693 = vmatpush2.msra.mxu0 %v634
  %694 = vmatprep.subr.mxu0 0.0
  %695 = vmatpush2.msra.mxu0 %v633
  %696 = vmatprep.subr.mxu0 0.0
  %697 = vmatpush2.msra.mxu0 %v632
  %698 = vmatprep.subr.mxu0 0.0
  %699 = vmatpush2.msra.mxu0 %v631
  %700 = vmatprep.subr.mxu0 0.0
  %701 = vmatpush2.msra.mxu0 %v630
  %702 = vmatprep.subr.mxu0 0.0
  %703 = vmatpush2.msra.mxu0 %v629
  %704 = vmatprep.subr.mxu0 0.0
  %705 = vmatpush2.msra.mxu0 %v628
  %706 = vmatprep.subr.mxu0 0.0
  %707 = vmatpush2.msra.mxu0 %v627
  %708 = vmatprep.subr.mxu0 0.0
  %709 = vmatpush2.msra.mxu0 %v626
  %710 = vmatprep.subr.mxu0 0.0
  %711 = vmatpush2.msra.mxu0 %v625
  %712 = vmatprep.mubr.f32.mxu0 %v462
  %713 = vmatmul.mubr.f32.gmra.mxu0 %v461
  %v714 = vpop.f32.mrf.mxu0
  %v715 = vadd.f32 %v646, %v714
  %v716 = vpop.f32.mrf.mxu0
  %717 = vdwg.mxu0
  %v718 = vld [vmem:[%s7] sm:$0x1]
  %v719 = vld [vmem:[%s8] sm:$0x1]
  %vm720 = vcmask 80896
  %v721 = vsel %vm720, %v715, 0.0
  %722 = vadd.xlane.f32.xlu0 %v721
  %v723 = vpop.xlane.xlu0 %722
  %v724 = vrcp.pop 10.0
  %v725 = vmul.f32 %v723, %v724
  %v726 = vsub.f32 %v715, %v725
  %v727 = vmul.f32 %v726, %v726
  %v728 = vsel %vm720, %v727, 0.0
  %729 = vadd.xlane.f32.xlu0 %v728
  %v730 = vpop.xlane.xlu0 %729
  %v731 = vmul.f32 %v730, %v724
  %v732 = vadd.f32 %v731, 1e-05
  %v733 = vrsqrt.pop %v732
  %v734 = vmul.f32 %v726, %v733
  %v736 = vlaneseq
  %v737 = vshrl.u32 %v736, 7
  %v738 = vsub.s32 0, %v737
  %v739 = vrot.slane %v718, %v738
  %v741 = vmul.f32 %v734, %v739
  %v743 = vlaneseq
  %v744 = vshrl.u32 %v743, 7
  %v745 = vsub.s32 0, %v744
  %v746 = vrot.slane %v719, %v745
  %v748 = vadd.f32 %v741, %v746
  %v749 = vmax.f32 %v748, 0.0
  %750 = vst.msk [vmem:[%s16] sm:$0xff] %vm720, %v749
  %v751 = vld [vmem:[%s6] sm:$0x1]
  %v753 = vlaneseq
  %v754 = vshrl.u32 %v753, 7
  %v755 = vsub.s32 0, %v754
  %v756 = vrot.slane %v751, %v755
  %789 = vrot.lane.b32.xlu0 %v609, 118
  %v790 = vpop.permute.xlu0 %789
  %791 = vrot.lane.b32.xlu0 %v610, 118
  %v792 = vpop.permute.xlu0 %791
  %793 = vrot.lane.b32.xlu0 %v611, 118
  %v794 = vpop.permute.xlu0 %793
  %795 = vrot.lane.b32.xlu0 %v612, 118
  %v796 = vpop.permute.xlu0 %795
  %797 = vrot.lane.b32.xlu0 %v613, 118
  %v798 = vpop.permute.xlu0 %797
  %799 = vrot.lane.b32.xlu0 %v614, 118
  %v800 = vpop.permute.xlu0 %799
  %801 = vrot.lane.b32.xlu0 %v615, 118
  %v802 = vpop.permute.xlu0 %801
  %803 = vrot.lane.b32.xlu0 %v616, 118
  %v804 = vpop.permute.xlu0 %803
  %805 = vrot.lane.b32.xlu0 %v617, 118
  %v806 = vpop.permute.xlu0 %805
  %807 = vrot.lane.b32.xlu0 %v618, 118
  %v808 = vpop.permute.xlu0 %807
  %809 = vrot.lane.b32.xlu0 %v619, 118
  %v810 = vpop.permute.xlu0 %809
  %811 = vrot.lane.b32.xlu0 %v620, 118
  %v812 = vpop.permute.xlu0 %811
  %813 = vrot.lane.b32.xlu0 %v621, 118
  %v814 = vpop.permute.xlu0 %813
  %815 = vrot.lane.b32.xlu0 %v622, 118
  %v816 = vpop.permute.xlu0 %815
  %817 = vrot.lane.b32.xlu0 %v623, 118
  %v818 = vpop.permute.xlu0 %817
  %819 = vrot.lane.b32.xlu0 %v624, 118
  %v820 = vpop.permute.xlu0 %819
  %821 = vrot.lane.b32.xlu0 %v625, 118
  %v822 = vpop.permute.xlu0 %821
  %823 = vrot.lane.b32.xlu0 %v626, 118
  %v824 = vpop.permute.xlu0 %823
  %825 = vrot.lane.b32.xlu0 %v627, 118
  %v826 = vpop.permute.xlu0 %825
  %827 = vrot.lane.b32.xlu0 %v628, 118
  %v828 = vpop.permute.xlu0 %827
  %829 = vrot.lane.b32.xlu0 %v629, 118
  %v830 = vpop.permute.xlu0 %829
  %831 = vrot.lane.b32.xlu0 %v630, 118
  %v832 = vpop.permute.xlu0 %831
  %833 = vrot.lane.b32.xlu0 %v631, 118
  %v834 = vpop.permute.xlu0 %833
  %835 = vrot.lane.b32.xlu0 %v632, 118
  %v836 = vpop.permute.xlu0 %835
  %837 = vrot.lane.b32.xlu0 %v633, 118
  %v838 = vpop.permute.xlu0 %837
  %839 = vrot.lane.b32.xlu0 %v634, 118
  %v840 = vpop.permute.xlu0 %839
  %841 = vrot.lane.b32.xlu0 %v635, 118
  %v842 = vpop.permute.xlu0 %841
  %843 = vrot.lane.b32.xlu0 %v636, 118
  %v844 = vpop.permute.xlu0 %843
  %845 = vrot.lane.b32.xlu0 %v637, 118
  %v846 = vpop.permute.xlu0 %845
  %847 = vrot.lane.b32.xlu0 %v638, 118
  %v848 = vpop.permute.xlu0 %847
  %849 = vrot.lane.b32.xlu0 %v639, 118
  %v850 = vpop.permute.xlu0 %849
  %851 = vrot.lane.b32.xlu0 %v640, 118
  %v852 = vpop.permute.xlu0 %851
  %885 = vrot.lane.b32.xlu0 %v756, 118
  %v886 = vpop.permute.xlu0 %885
  %888 = vmatprep.subr.mxu0 0.0
  %889 = vmatpush1.msra.mxu0 %v820
  %890 = vmatprep.subr.mxu0 0.0
  %891 = vmatpush1.msra.mxu0 %v818
  %892 = vmatprep.subr.mxu0 0.0
  %893 = vmatpush1.msra.mxu0 %v816
  %894 = vmatprep.subr.mxu0 0.0
  %895 = vmatpush1.msra.mxu0 %v814
  %896 = vmatprep.subr.mxu0 0.0
  %897 = vmatpush1.msra.mxu0 %v812
  %898 = vmatprep.subr.mxu0 0.0
  %899 = vmatpush1.msra.mxu0 %v810
  %900 = vmatprep.subr.mxu0 0.0
  %901 = vmatpush1.msra.mxu0 %v808
  %902 = vmatprep.subr.mxu0 0.0
  %903 = vmatpush1.msra.mxu0 %v806
  %904 = vmatprep.subr.mxu0 0.0
  %905 = vmatpush1.msra.mxu0 %v804
  %906 = vmatprep.subr.mxu0 0.0
  %907 = vmatpush1.msra.mxu0 %v802
  %908 = vmatprep.subr.mxu0 0.0
  %909 = vmatpush1.msra.mxu0 %v800
  %910 = vmatprep.subr.mxu0 0.0
  %911 = vmatpush1.msra.mxu0 %v798
  %912 = vmatprep.subr.mxu0 0.0
  %913 = vmatpush1.msra.mxu0 %v796
  %914 = vmatprep.subr.mxu0 0.0
  %915 = vmatpush1.msra.mxu0 %v794
  %916 = vmatprep.subr.mxu0 0.0
  %917 = vmatpush1.msra.mxu0 %v792
  %918 = vmatprep.subr.mxu0 0.0
  %919 = vmatpush1.msra.mxu0 %v790
  %920 = vmatprep.subr.mxu0 0.0
  %921 = vmatpush2.msra.mxu0 %v852
  %922 = vmatprep.subr.mxu0 0.0
  %923 = vmatpush2.msra.mxu0 %v850
  %924 = vmatprep.subr.mxu0 0.0
  %925 = vmatpush2.msra.mxu0 %v848
  %926 = vmatprep.subr.mxu0 0.0
  %927 = vmatpush2.msra.mxu0 %v846
  %928 = vmatprep.subr.mxu0 0.0
  %929 = vmatpush2.msra.mxu0 %v844
  %930 = vmatprep.subr.mxu0 0.0
  %931 = vmatpush2.msra.mxu0 %v842
  %932 = vmatprep.subr.mxu0 0.0
  %933 = vmatpush2.msra.mxu0 %v840
  %934 = vmatprep.subr.mxu0 0.0
  %935 = vmatpush2.msra.mxu0 %v838
  %936 = vmatprep.subr.mxu0 0.0
  %937 = vmatpush2.msra.mxu0 %v836
  %938 = vmatprep.subr.mxu0 0.0
  %939 = vmatpush2.msra.mxu0 %v834
  %940 = vmatprep.subr.mxu0 0.0
  %941 = vmatpush2.msra.mxu0 %v832
  %942 = vmatprep.subr.mxu0 0.0
  %943 = vmatpush2.msra.mxu0 %v830
  %944 = vmatprep.subr.mxu0 0.0
  %945 = vmatpush2.msra.mxu0 %v828
  %946 = vmatprep.subr.mxu0 0.0
  %947 = vmatpush2.msra.mxu0 %v826
  %948 = vmatprep.subr.mxu0 0.0
  %949 = vmatpush2.msra.mxu0 %v824
  %950 = vmatprep.subr.mxu0 0.0
  %951 = vmatpush2.msra.mxu0 %v822
  %952 = vmatprep.mubr.f32.mxu0 %v510
  %953 = vmatmul.mubr.f32.gmra.mxu0 %v509
  %v954 = vpop.f32.mrf.mxu0
  %v955 = vadd.f32 %v886, %v954
  %v956 = vpop.f32.mrf.mxu0
  %957 = vdwg.mxu0
  %v958 = vld [vmem:[%s7] sm:$0x1]
  %v959 = vld [vmem:[%s8] sm:$0x1]
  %v960 = vsel %vm720, %v955, 0.0
  %961 = vadd.xlane.f32.xlu0 %v960
  %v962 = vpop.xlane.xlu0 %961
  %v963 = vmul.f32 %v962, %v724
  %v964 = vsub.f32 %v955, %v963
  %v965 = vmul.f32 %v964, %v964
  %v966 = vsel %vm720, %v965, 0.0
  %967 = vadd.xlane.f32.xlu0 %v966
  %v968 = vpop.xlane.xlu0 %967
  %v969 = vmul.f32 %v968, %v724
  %v970 = vadd.f32 %v969, 1e-05
  %v971 = vrsqrt.pop %v970
  %v972 = vmul.f32 %v964, %v971
  %v974 = vlaneseq
  %v975 = vshrl.u32 %v974, 7
  %v976 = vsub.s32 0, %v975
  %v977 = vrot.slane %v958, %v976
  %978 = vrot.lane.b32.xlu0 %v977, 118
  %v979 = vpop.permute.xlu0 %978
  %v981 = vmul.f32 %v972, %v979
  %v983 = vlaneseq
  %v984 = vshrl.u32 %v983, 7
  %v985 = vsub.s32 0, %v984
  %v986 = vrot.slane %v959, %v985
  %987 = vrot.lane.b32.xlu0 %v986, 118
  %v988 = vpop.permute.xlu0 %987
  %v990 = vadd.f32 %v981, %v988
  %v991 = vmax.f32 %v990, 0.0
  %993 = vrot.lane.b32.xlu0 %v991, 10
  %v994 = vpop.permute.xlu0 %993
  %vm996 = vcmask 162896
  %997 = vst.msk [vmem:[%s16] sm:$0xff] %vm996, %v994
  %v998 = vld [vmem:[%s6] sm:$0x1]
  %v1000 = vlaneseq
  %v1001 = vshrl.u32 %v1000, 7
  %v1002 = vsub.s32 0, %v1001
  %v1003 = vrot.slane %v998, %v1002
  %1004 = vrot.lane.b32.xlu0 %v609, 108
  %v1005 = vpop.permute.xlu0 %1004
  %1006 = vrot.lane.b32.xlu0 %v610, 108
  %v1007 = vpop.permute.xlu0 %1006
  %1008 = vrot.lane.b32.xlu0 %v611, 108
  %v1009 = vpop.permute.xlu0 %1008
  %1010 = vrot.lane.b32.xlu0 %v612, 108
  %v1011 = vpop.permute.xlu0 %1010
  %1012 = vrot.lane.b32.xlu0 %v613, 108
  %v1013 = vpop.permute.xlu0 %1012
  %1014 = vrot.lane.b32.xlu0 %v614, 108
  %v1015 = vpop.permute.xlu0 %1014
  %1016 = vrot.lane.b32.xlu0 %v615, 108
  %v1017 = vpop.permute.xlu0 %1016
  %1018 = vrot.lane.b32.xlu0 %v616, 108
  %v1019 = vpop.permute.xlu0 %1018
  %1020 = vrot.lane.b32.xlu0 %v617, 108
  %v1021 = vpop.permute.xlu0 %1020
  %1022 = vrot.lane.b32.xlu0 %v618, 108
  %v1023 = vpop.permute.xlu0 %1022
  %1024 = vrot.lane.b32.xlu0 %v619, 108
  %v1025 = vpop.permute.xlu0 %1024
  %1026 = vrot.lane.b32.xlu0 %v620, 108
  %v1027 = vpop.permute.xlu0 %1026
  %1028 = vrot.lane.b32.xlu0 %v621, 108
  %v1029 = vpop.permute.xlu0 %1028
  %1030 = vrot.lane.b32.xlu0 %v622, 108
  %v1031 = vpop.permute.xlu0 %1030
  %1032 = vrot.lane.b32.xlu0 %v623, 108
  %v1033 = vpop.permute.xlu0 %1032
  %1034 = vrot.lane.b32.xlu0 %v624, 108
  %v1035 = vpop.permute.xlu0 %1034
  %1036 = vrot.lane.b32.xlu0 %v625, 108
  %v1037 = vpop.permute.xlu0 %1036
  %1038 = vrot.lane.b32.xlu0 %v626, 108
  %v1039 = vpop.permute.xlu0 %1038
  %1040 = vrot.lane.b32.xlu0 %v627, 108
  %v1041 = vpop.permute.xlu0 %1040
  %1042 = vrot.lane.b32.xlu0 %v628, 108
  %v1043 = vpop.permute.xlu0 %1042
  %1044 = vrot.lane.b32.xlu0 %v629, 108
  %v1045 = vpop.permute.xlu0 %1044
  %1046 = vrot.lane.b32.xlu0 %v630, 108
  %v1047 = vpop.permute.xlu0 %1046
  %1048 = vrot.lane.b32.xlu0 %v631, 108
  %v1049 = vpop.permute.xlu0 %1048
  %1050 = vrot.lane.b32.xlu0 %v632, 108
  %v1051 = vpop.permute.xlu0 %1050
  %1052 = vrot.lane.b32.xlu0 %v633, 108
  %v1053 = vpop.permute.xlu0 %1052
  %1054 = vrot.lane.b32.xlu0 %v634, 108
  %v1055 = vpop.permute.xlu0 %1054
  %1056 = vrot.lane.b32.xlu0 %v635, 108
  %v1057 = vpop.permute.xlu0 %1056
  %1058 = vrot.lane.b32.xlu0 %v636, 108
  %v1059 = vpop.permute.xlu0 %1058
  %1060 = vrot.lane.b32.xlu0 %v637, 108
  %v1061 = vpop.permute.xlu0 %1060
  %1062 = vrot.lane.b32.xlu0 %v638, 108
  %v1063 = vpop.permute.xlu0 %1062
  %1064 = vrot.lane.b32.xlu0 %v639, 108
  %v1065 = vpop.permute.xlu0 %1064
  %1066 = vrot.lane.b32.xlu0 %v640, 108
  %v1067 = vpop.permute.xlu0 %1066
  %1100 = vrot.lane.b32.xlu0 %v1003, 108
  %v1101 = vpop.permute.xlu0 %1100
  %1103 = vmatprep.subr.mxu0 0.0
  %1104 = vmatpush1.msra.mxu0 %v1035
  %1105 = vmatprep.subr.mxu0 0.0
  %1106 = vmatpush1.msra.mxu0 %v1033
  %1107 = vmatprep.subr.mxu0 0.0
  %1108 = vmatpush1.msra.mxu0 %v1031
  %1109 = vmatprep.subr.mxu0 0.0
  %1110 = vmatpush1.msra.mxu0 %v1029
  %1111 = vmatprep.subr.mxu0 0.0
  %1112 = vmatpush1.msra.mxu0 %v1027
  %1113 = vmatprep.subr.mxu0 0.0
  %1114 = vmatpush1.msra.mxu0 %v1025
  %1115 = vmatprep.subr.mxu0 0.0
  %1116 = vmatpush1.msra.mxu0 %v1023
  %1117 = vmatprep.subr.mxu0 0.0
  %1118 = vmatpush1.msra.mxu0 %v1021
  %1119 = vmatprep.subr.mxu0 0.0
  %1120 = vmatpush1.msra.mxu0 %v1019
  %1121 = vmatprep.subr.mxu0 0.0
  %1122 = vmatpush1.msra.mxu0 %v1017
  %1123 = vmatprep.subr.mxu0 0.0
  %1124 = vmatpush1.msra.mxu0 %v1015
  %1125 = vmatprep.subr.mxu0 0.0
  %1126 = vmatpush1.msra.mxu0 %v1013
  %1127 = vmatprep.subr.mxu0 0.0
  %1128 = vmatpush1.msra.mxu0 %v1011
  %1129 = vmatprep.subr.mxu0 0.0
  %1130 = vmatpush1.msra.mxu0 %v1009
  %1131 = vmatprep.subr.mxu0 0.0
  %1132 = vmatpush1.msra.mxu0 %v1007
  %1133 = vmatprep.subr.mxu0 0.0
  %1134 = vmatpush1.msra.mxu0 %v1005
  %1135 = vmatprep.subr.mxu0 0.0
  %1136 = vmatpush2.msra.mxu0 %v1067
  %1137 = vmatprep.subr.mxu0 0.0
  %1138 = vmatpush2.msra.mxu0 %v1065
  %1139 = vmatprep.subr.mxu0 0.0
  %1140 = vmatpush2.msra.mxu0 %v1063
  %1141 = vmatprep.subr.mxu0 0.0
  %1142 = vmatpush2.msra.mxu0 %v1061
  %1143 = vmatprep.subr.mxu0 0.0
  %1144 = vmatpush2.msra.mxu0 %v1059
  %1145 = vmatprep.subr.mxu0 0.0
  %1146 = vmatpush2.msra.mxu0 %v1057
  %1147 = vmatprep.subr.mxu0 0.0
  %1148 = vmatpush2.msra.mxu0 %v1055
  %1149 = vmatprep.subr.mxu0 0.0
  %1150 = vmatpush2.msra.mxu0 %v1053
  %1151 = vmatprep.subr.mxu0 0.0
  %1152 = vmatpush2.msra.mxu0 %v1051
  %1153 = vmatprep.subr.mxu0 0.0
  %1154 = vmatpush2.msra.mxu0 %v1049
  %1155 = vmatprep.subr.mxu0 0.0
  %1156 = vmatpush2.msra.mxu0 %v1047
  %1157 = vmatprep.subr.mxu0 0.0
  %1158 = vmatpush2.msra.mxu0 %v1045
  %1159 = vmatprep.subr.mxu0 0.0
  %1160 = vmatpush2.msra.mxu0 %v1043
  %1161 = vmatprep.subr.mxu0 0.0
  %1162 = vmatpush2.msra.mxu0 %v1041
  %1163 = vmatprep.subr.mxu0 0.0
  %1164 = vmatpush2.msra.mxu0 %v1039
  %1165 = vmatprep.subr.mxu0 0.0
  %1166 = vmatpush2.msra.mxu0 %v1037
  %1167 = vmatprep.mubr.f32.mxu0 %v558
  %1168 = vmatmul.mubr.f32.gmra.mxu0 %v557
  %v1169 = vpop.f32.mrf.mxu0
  %v1170 = vadd.f32 %v1101, %v1169
  %v1171 = vpop.f32.mrf.mxu0
  %1172 = vdwg.mxu0
  %v1173 = vld [vmem:[%s7] sm:$0x1]
  %v1174 = vld [vmem:[%s8] sm:$0x1]
  %v1175 = vsel %vm720, %v1170, 0.0
  %1176 = vadd.xlane.f32.xlu0 %v1175
  %v1177 = vpop.xlane.xlu0 %1176
  %v1178 = vmul.f32 %v1177, %v724
  %v1179 = vsub.f32 %v1170, %v1178
  %v1180 = vmul.f32 %v1179, %v1179
  %v1181 = vsel %vm720, %v1180, 0.0
  %1182 = vadd.xlane.f32.xlu0 %v1181
  %v1183 = vpop.xlane.xlu0 %1182
  %v1184 = vmul.f32 %v1183, %v724
  %v1185 = vadd.f32 %v1184, 1e-05
  %v1186 = vrsqrt.pop %v1185
  %v1187 = vmul.f32 %v1179, %v1186
  %v1189 = vlaneseq
  %v1190 = vshrl.u32 %v1189, 7
  %v1191 = vsub.s32 0, %v1190
  %v1192 = vrot.slane %v1173, %v1191
  %1193 = vrot.lane.b32.xlu0 %v1192, 108
  %v1194 = vpop.permute.xlu0 %1193
  %v1196 = vmul.f32 %v1187, %v1194
  %v1198 = vlaneseq
  %v1199 = vshrl.u32 %v1198, 7
  %v1200 = vsub.s32 0, %v1199
  %v1201 = vrot.slane %v1174, %v1200
  %1202 = vrot.lane.b32.xlu0 %v1201, 108
  %v1203 = vpop.permute.xlu0 %1202
  %v1205 = vadd.f32 %v1196, %v1203
  %v1206 = vmax.f32 %v1205, 0.0
  %1208 = vrot.lane.b32.xlu0 %v1206, 20
  %v1209 = vpop.permute.xlu0 %1208
  %vm1211 = vcmask 244896
  %1212 = vst.msk [vmem:[%s16] sm:$0xff] %vm1211, %v1209
  %v1213 = vld [vmem:[%s6] sm:$0x1]
  %v1215 = vlaneseq
  %v1216 = vshrl.u32 %v1215, 7
  %v1217 = vsub.s32 0, %v1216
  %v1218 = vrot.slane %v1213, %v1217
  %1219 = vrot.lane.b32.xlu0 %v609, 98
  %v1220 = vpop.permute.xlu0 %1219
  %1221 = vrot.lane.b32.xlu0 %v610, 98
  %v1222 = vpop.permute.xlu0 %1221
  %1223 = vrot.lane.b32.xlu0 %v611, 98
  %v1224 = vpop.permute.xlu0 %1223
  %1225 = vrot.lane.b32.xlu0 %v612, 98
  %v1226 = vpop.permute.xlu0 %1225
  %1227 = vrot.lane.b32.xlu0 %v613, 98
  %v1228 = vpop.permute.xlu0 %1227
  %1229 = vrot.lane.b32.xlu0 %v614, 98
  %v1230 = vpop.permute.xlu0 %1229
  %1231 = vrot.lane.b32.xlu0 %v615, 98
  %v1232 = vpop.permute.xlu0 %1231
  %1233 = vrot.lane.b32.xlu0 %v616, 98
  %v1234 = vpop.permute.xlu0 %1233
  %1235 = vrot.lane.b32.xlu0 %v617, 98
  %v1236 = vpop.permute.xlu0 %1235
  %1237 = vrot.lane.b32.xlu0 %v618, 98
  %v1238 = vpop.permute.xlu0 %1237
  %1239 = vrot.lane.b32.xlu0 %v619, 98
  %v1240 = vpop.permute.xlu0 %1239
  %1241 = vrot.lane.b32.xlu0 %v620, 98
  %v1242 = vpop.permute.xlu0 %1241
  %1243 = vrot.lane.b32.xlu0 %v621, 98
  %v1244 = vpop.permute.xlu0 %1243
  %1245 = vrot.lane.b32.xlu0 %v622, 98
  %v1246 = vpop.permute.xlu0 %1245
  %1247 = vrot.lane.b32.xlu0 %v623, 98
  %v1248 = vpop.permute.xlu0 %1247
  %1249 = vrot.lane.b32.xlu0 %v624, 98
  %v1250 = vpop.permute.xlu0 %1249
  %1251 = vrot.lane.b32.xlu0 %v625, 98
  %v1252 = vpop.permute.xlu0 %1251
  %1253 = vrot.lane.b32.xlu0 %v626, 98
  %v1254 = vpop.permute.xlu0 %1253
  %1255 = vrot.lane.b32.xlu0 %v627, 98
  %v1256 = vpop.permute.xlu0 %1255
  %1257 = vrot.lane.b32.xlu0 %v628, 98
  %v1258 = vpop.permute.xlu0 %1257
  %1259 = vrot.lane.b32.xlu0 %v629, 98
  %v1260 = vpop.permute.xlu0 %1259
  %1261 = vrot.lane.b32.xlu0 %v630, 98
  %v1262 = vpop.permute.xlu0 %1261
  %1263 = vrot.lane.b32.xlu0 %v631, 98
  %v1264 = vpop.permute.xlu0 %1263
  %1265 = vrot.lane.b32.xlu0 %v632, 98
  %v1266 = vpop.permute.xlu0 %1265
  %1267 = vrot.lane.b32.xlu0 %v633, 98
  %v1268 = vpop.permute.xlu0 %1267
  %1269 = vrot.lane.b32.xlu0 %v634, 98
  %v1270 = vpop.permute.xlu0 %1269
  %1271 = vrot.lane.b32.xlu0 %v635, 98
  %v1272 = vpop.permute.xlu0 %1271
  %1273 = vrot.lane.b32.xlu0 %v636, 98
  %v1274 = vpop.permute.xlu0 %1273
  %1275 = vrot.lane.b32.xlu0 %v637, 98
  %v1276 = vpop.permute.xlu0 %1275
  %1277 = vrot.lane.b32.xlu0 %v638, 98
  %v1278 = vpop.permute.xlu0 %1277
  %1279 = vrot.lane.b32.xlu0 %v639, 98
  %v1280 = vpop.permute.xlu0 %1279
  %1281 = vrot.lane.b32.xlu0 %v640, 98
  %v1282 = vpop.permute.xlu0 %1281
  %1315 = vrot.lane.b32.xlu0 %v1218, 98
  %v1316 = vpop.permute.xlu0 %1315
  %1318 = vmatprep.subr.mxu0 0.0
  %1319 = vmatpush1.msra.mxu0 %v1250
  %1320 = vmatprep.subr.mxu0 0.0
  %1321 = vmatpush1.msra.mxu0 %v1248
  %1322 = vmatprep.subr.mxu0 0.0
  %1323 = vmatpush1.msra.mxu0 %v1246
  %1324 = vmatprep.subr.mxu0 0.0
  %1325 = vmatpush1.msra.mxu0 %v1244
  %1326 = vmatprep.subr.mxu0 0.0
  %1327 = vmatpush1.msra.mxu0 %v1242
  %1328 = vmatprep.subr.mxu0 0.0
  %1329 = vmatpush1.msra.mxu0 %v1240
  %1330 = vmatprep.subr.mxu0 0.0
  %1331 = vmatpush1.msra.mxu0 %v1238
  %1332 = vmatprep.subr.mxu0 0.0
  %1333 = vmatpush1.msra.mxu0 %v1236
  %1334 = vmatprep.subr.mxu0 0.0
  %1335 = vmatpush1.msra.mxu0 %v1234
  %1336 = vmatprep.subr.mxu0 0.0
  %1337 = vmatpush1.msra.mxu0 %v1232
  %1338 = vmatprep.subr.mxu0 0.0
  %1339 = vmatpush1.msra.mxu0 %v1230
  %1340 = vmatprep.subr.mxu0 0.0
  %1341 = vmatpush1.msra.mxu0 %v1228
  %1342 = vmatprep.subr.mxu0 0.0
  %1343 = vmatpush1.msra.mxu0 %v1226
  %1344 = vmatprep.subr.mxu0 0.0
  %1345 = vmatpush1.msra.mxu0 %v1224
  %1346 = vmatprep.subr.mxu0 0.0
  %1347 = vmatpush1.msra.mxu0 %v1222
  %1348 = vmatprep.subr.mxu0 0.0
  %1349 = vmatpush1.msra.mxu0 %v1220
  %1350 = vmatprep.subr.mxu0 0.0
  %1351 = vmatpush2.msra.mxu0 %v1282
  %1352 = vmatprep.subr.mxu0 0.0
  %1353 = vmatpush2.msra.mxu0 %v1280
  %1354 = vmatprep.subr.mxu0 0.0
  %1355 = vmatpush2.msra.mxu0 %v1278
  %1356 = vmatprep.subr.mxu0 0.0
  %1357 = vmatpush2.msra.mxu0 %v1276
  %1358 = vmatprep.subr.mxu0 0.0
  %1359 = vmatpush2.msra.mxu0 %v1274
  %1360 = vmatprep.subr.mxu0 0.0
  %1361 = vmatpush2.msra.mxu0 %v1272
  %1362 = vmatprep.subr.mxu0 0.0
  %1363 = vmatpush2.msra.mxu0 %v1270
  %1364 = vmatprep.subr.mxu0 0.0
  %1365 = vmatpush2.msra.mxu0 %v1268
  %1366 = vmatprep.subr.mxu0 0.0
  %1367 = vmatpush2.msra.mxu0 %v1266
  %1368 = vmatprep.subr.mxu0 0.0
  %1369 = vmatpush2.msra.mxu0 %v1264
  %1370 = vmatprep.subr.mxu0 0.0
  %1371 = vmatpush2.msra.mxu0 %v1262
  %1372 = vmatprep.subr.mxu0 0.0
  %1373 = vmatpush2.msra.mxu0 %v1260
  %1374 = vmatprep.subr.mxu0 0.0
  %1375 = vmatpush2.msra.mxu0 %v1258
  %1376 = vmatprep.subr.mxu0 0.0
  %1377 = vmatpush2.msra.mxu0 %v1256
  %1378 = vmatprep.subr.mxu0 0.0
  %1379 = vmatpush2.msra.mxu0 %v1254
  %1380 = vmatprep.subr.mxu0 0.0
  %1381 = vmatpush2.msra.mxu0 %v1252
  %1382 = vmatprep.mubr.f32.mxu0 %v606
  %1383 = vmatmul.mubr.f32.gmra.mxu0 %v605
  %v1384 = vpop.f32.mrf.mxu0
  %v1385 = vadd.f32 %v1316, %v1384
  %v1386 = vpop.f32.mrf.mxu0
  %1387 = vdwg.mxu0
  %v1388 = vld [vmem:[%s7] sm:$0x1]
  %v1389 = vld [vmem:[%s8] sm:$0x1]
  %v1390 = vsel %vm720, %v1385, 0.0
  %1391 = vadd.xlane.f32.xlu0 %v1390
  %v1392 = vpop.xlane.xlu0 %1391
  %v1393 = vmul.f32 %v1392, %v724
  %v1394 = vsub.f32 %v1385, %v1393
  %v1395 = vmul.f32 %v1394, %v1394
  %v1396 = vsel %vm720, %v1395, 0.0
  %1397 = vadd.xlane.f32.xlu0 %v1396
  %v1398 = vpop.xlane.xlu0 %1397
  %v1399 = vmul.f32 %v1398, %v724
  %v1400 = vadd.f32 %v1399, 1e-05
  %v1401 = vrsqrt.pop %v1400
  %v1402 = vmul.f32 %v1394, %v1401
  %v1404 = vlaneseq
  %v1405 = vshrl.u32 %v1404, 7
  %v1406 = vsub.s32 0, %v1405
  %v1407 = vrot.slane %v1388, %v1406
  %1408 = vrot.lane.b32.xlu0 %v1407, 98
  %v1409 = vpop.permute.xlu0 %1408
  %v1411 = vmul.f32 %v1402, %v1409
  %v1413 = vlaneseq
  %v1414 = vshrl.u32 %v1413, 7
  %v1415 = vsub.s32 0, %v1414
  %v1416 = vrot.slane %v1389, %v1415
  %1417 = vrot.lane.b32.xlu0 %v1416, 98
  %v1418 = vpop.permute.xlu0 %1417
  %v1420 = vadd.f32 %v1411, %v1418
  %v1421 = vmax.f32 %v1420, 0.0
  %1423 = vrot.lane.b32.xlu0 %v1421, 30
  %v1424 = vpop.permute.xlu0 %1423
  %vm1426 = vcmask 326896
  %1427 = vst.msk [vmem:[%s16] sm:$0xff] %vm1426, %v1424
  %v1428 = vrot.slane %v1421, 4
  %v1430 = vsub.f32 %v991, %v1428
  %vm1431 = vcmask 76800
  %v1432 = vsel %vm1431, %v1430, 0.0
  %1433 = vadd.xlane.f32.xlu0 %v1432
  %v1434 = vpop.xlane.xlu0 %1433
  %v1435 = vrot.slane %v1434, 4
  %v1436 = vadd.f32 %v1434, %v1435
  %v1437 = vrot.slane %v1436, 2
  %v1438 = vadd.f32 %v1436, %v1437
  %v1439 = vrot.slane %v1438, 1
  %v1440 = vadd.f32 %v1438, %v1439
  %s1441 = vtos %v1440
  %v1442 = vrcp.pop 40.0
  %s1443 = vtos %v1442
  %s1444 = smul.f32 %s1441, %s1443
  %v1447 = vrot.slane %v605, 4
  %v1448 = vrot.slane %v606, 4
  %v1451 = vsub.f32 %v509, %v1447
  %v1452 = vsub.f32 %v510, %v1448
  %vm1453 = vcmask 1043456
  %v1454 = vsel %vm1453, %v1451, 0.0
  %v1455 = vsel %vm1453, %v1452, 0.0
  %v1456 = vadd.f32 %v1454, %v1455
  %1457 = vadd.xlane.f32.xlu0 %v1456
  %v1458 = vpop.xlane.xlu0 %1457
  %v1459 = vrot.slane %v1458, 4
  %v1460 = vadd.f32 %v1458, %v1459
  %v1461 = vrot.slane %v1460, 2
  %v1462 = vadd.f32 %v1460, %v1461
  %v1463 = vrot.slane %v1462, 1
  %v1464 = vadd.f32 %v1462, %v1463
  %s1465 = vtos %v1464
  %v1466 = vrcp.pop 1024.0
  %s1467 = vtos %v1466
  %s1468 = smul.f32 %s1465, %s1467
  %v1469 = vlaneseq
  %v1470 = vshrl.u32 %v1469, 7
  %vm1471 = vcmp.lt.s32.totalorder %v1470, 4
  %v1472 = vmul.f32 %v749, %v991
  %v1473 = vstv %s1444
  %v1474 = vmul.f32 %v1206, %v1473
  %v1475 = vsel %vm1471, 1, 0
  %vm1476 = vcmp.eq.s32.totalorder %v1475, 1
  %v1477 = vsel %vm1476, %v1472, %v1474
  %v1478 = vld [vmem:[%s9] sm:$0xff]
  %v1479 = vld [vmem:[%s9 + $0x8] sm:$0xff]
  %v1480 = vld [vmem:[%s9 + $0x10] sm:$0x3]
  %v1481 = vld [vmem:[%s9 + $0x18] sm:$0x3]
  %v1482 = vld [vmem:[%s10] sm:$0x3]
  %v1484 = vlaneseq
  %v1485 = vshrl.u32 %v1484, 7
  %v1486 = vsub.s32 0, %v1485
  %v1487 = vrot.slane %v1482, %v1486
  %v1488 = vlaneseq
  %v1489 = vshrl.u32 %v1488, 7
  %v1490 = vsub.s32 1, %v1489
  %v1491 = vrot.slane %v1482, %v1490
  %v1495 = vsel %vm720, %v1477, 0
  %vm1497 = vcmask 1041408
  %v1499 = vsel %vm1497, %v1480, 0
  %v1502 = vsel %vm1497, %v1481, 0
  %1504 = vmatprep.subr.mxu0 0.0
  %1505 = vmatpush1.msra.mxu0 0.0
  %1506 = vmatprep.subr.mxu0 0.0
  %1507 = vmatpush1.msra.mxu0 0.0
  %1508 = vmatprep.subr.mxu0 0.0
  %1509 = vmatpush1.msra.mxu0 0.0
  %1510 = vmatprep.subr.mxu0 0.0
  %1511 = vmatpush1.msra.mxu0 0.0
  %1512 = vmatprep.subr.mxu0 0.0
  %1513 = vmatpush1.msra.mxu0 0.0
  %1514 = vmatprep.subr.mxu0 0.0
  %1515 = vmatpush1.msra.mxu0 0.0
  %1516 = vmatprep.subr.mxu0 0.0
  %1517 = vmatpush1.msra.mxu0 0.0
  %1518 = vmatprep.subr.mxu0 0.0
  %1519 = vmatpush1.msra.mxu0 0.0
  %1520 = vmatprep.subr.mxu0 0.0
  %1521 = vmatpush1.msra.mxu0 0.0
  %1522 = vmatprep.subr.mxu0 0.0
  %1523 = vmatpush1.msra.mxu0 0.0
  %1524 = vmatprep.subr.mxu0 0.0
  %1525 = vmatpush1.msra.mxu0 0.0
  %1526 = vmatprep.subr.mxu0 0.0
  %1527 = vmatpush1.msra.mxu0 0.0
  %1528 = vmatprep.subr.mxu0 0.0
  %1529 = vmatpush1.msra.mxu0 0.0
  %1530 = vmatprep.subr.mxu0 0.0
  %1531 = vmatpush1.msra.mxu0 0.0
  %1532 = vmatprep.subr.mxu0 %v1502
  %1533 = vmatpush1.msra.mxu0 %v1499
  %1534 = vmatprep.subr.mxu0 %v1479
  %1535 = vmatpush1.msra.mxu0 %v1478
  %1536 = vmatprep.subr.mxu0 0.0
  %1537 = vmatpush2.msra.mxu0 0.0
  %1538 = vmatprep.subr.mxu0 0.0
  %1539 = vmatpush2.msra.mxu0 0.0
  %1540 = vmatprep.subr.mxu0 0.0
  %1541 = vmatpush2.msra.mxu0 0.0
  %1542 = vmatprep.subr.mxu0 0.0
  %1543 = vmatpush2.msra.mxu0 0.0
  %1544 = vmatprep.subr.mxu0 0.0
  %1545 = vmatpush2.msra.mxu0 0.0
  %1546 = vmatprep.subr.mxu0 0.0
  %1547 = vmatpush2.msra.mxu0 0.0
  %1548 = vmatprep.subr.mxu0 0.0
  %1549 = vmatpush2.msra.mxu0 0.0
  %1550 = vmatprep.subr.mxu0 0.0
  %1551 = vmatpush2.msra.mxu0 0.0
  %1552 = vmatprep.subr.mxu0 0.0
  %1553 = vmatpush2.msra.mxu0 0.0
  %1554 = vmatprep.subr.mxu0 0.0
  %1555 = vmatpush2.msra.mxu0 0.0
  %1556 = vmatprep.subr.mxu0 0.0
  %1557 = vmatpush2.msra.mxu0 0.0
  %1558 = vmatprep.subr.mxu0 0.0
  %1559 = vmatpush2.msra.mxu0 0.0
  %1560 = vmatprep.subr.mxu0 0.0
  %1561 = vmatpush2.msra.mxu0 0.0
  %1562 = vmatprep.subr.mxu0 0.0
  %1563 = vmatpush2.msra.mxu0 0.0
  %1564 = vmatprep.subr.mxu0 0.0
  %1565 = vmatpush2.msra.mxu0 0.0
  %1566 = vmatprep.subr.mxu0 0.0
  %1567 = vmatpush2.msra.mxu0 0.0
  %1568 = vmatprep.mubr.f32.mxu0 0.0
  %1569 = vmatmul.mubr.f32.gmra.mxu0 %v1495
  %v1570 = vpop.f32.mrf.mxu0
  %v1571 = vadd.f32 %v1487, %v1570
  %v1572 = vpop.f32.mrf.mxu0
  %v1573 = vadd.f32 %v1491, %v1572
  %1574 = vdwg.mxu0
  %v1575 = vld [vmem:[%s11] sm:$0x3]
  %v1576 = vld [vmem:[%s12] sm:$0x3]
  %v1577 = vadd.f32 %v1571, %v1573
  %1578 = vadd.xlane.f32.xlu0 %v1577
  %v1579 = vpop.xlane.xlu0 %1578
  %v1580 = vmul.f32 %v1579, %v421
  %v1581 = vsub.f32 %v1571, %v1580
  %v1582 = vsub.f32 %v1573, %v1580
  %v1583 = vmul.f32 %v1581, %v1581
  %v1584 = vmul.f32 %v1582, %v1582
  %v1585 = vadd.f32 %v1583, %v1584
  %1586 = vadd.xlane.f32.xlu0 %v1585
  %v1587 = vpop.xlane.xlu0 %1586
  %v1588 = vmul.f32 %v1587, %v421
  %v1589 = vadd.f32 %v1588, 1e-05
  %v1590 = vrsqrt.pop %v1589
  %v1591 = vmul.f32 %v1581, %v1590
  %v1592 = vmul.f32 %v1582, %v1590
  %v1594 = vlaneseq
  %v1595 = vshrl.u32 %v1594, 7
  %v1596 = vsub.s32 0, %v1595
  %v1597 = vrot.slane %v1575, %v1596
  %v1598 = vlaneseq
  %v1599 = vshrl.u32 %v1598, 7
  %v1600 = vsub.s32 1, %v1599
  %v1601 = vrot.slane %v1575, %v1600
  %v1604 = vmul.f32 %v1591, %v1597
  %v1605 = vmul.f32 %v1592, %v1601
  %v1607 = vlaneseq
  %v1608 = vshrl.u32 %v1607, 7
  %v1609 = vsub.s32 0, %v1608
  %v1610 = vrot.slane %v1576, %v1609
  %v1611 = vlaneseq
  %v1612 = vshrl.u32 %v1611, 7
  %v1613 = vsub.s32 1, %v1612
  %v1614 = vrot.slane %v1576, %v1613
  %v1617 = vadd.f32 %v1604, %v1610
  %v1618 = vadd.f32 %v1605, %v1614
  %v1619 = vmax.f32 %v1617, 0.0
  %v1620 = vmax.f32 %v1618, 0.0
  %v1621 = vmul.f32 %v461, %v509
  %v1622 = vmul.f32 %v462, %v510
  %v1623 = vstv %s1468
  %v1624 = vmul.f32 %v557, %v1623
  %v1625 = vmul.f32 %v558, %v1623
  %v1626 = vsel %vm1476, %v1621, %v1624
  %v1627 = vsel %vm1476, %v1622, %v1625
  %v1628 = vadd.f32 %v1619, %v1626
  %v1629 = vadd.f32 %v1620, %v1627
  %v1630 = vld [vmem:[%s13] sm:$0xff]
  %v1631 = vld [vmem:[%s13 + $0x8] sm:$0xff]
  %v1632 = vld [vmem:[%s13 + $0x10] sm:$0xff]
  %v1633 = vld [vmem:[%s13 + $0x18] sm:$0xff]
  %v1634 = vld [vmem:[%s13 + $0x20] sm:$0xff]
  %v1635 = vld [vmem:[%s13 + $0x28] sm:$0xff]
  %v1636 = vld [vmem:[%s13 + $0x30] sm:$0xff]
  %v1637 = vld [vmem:[%s13 + $0x38] sm:$0xff]
  %v1638 = vld [vmem:[%s13 + $0x40] sm:$0xff]
  %v1639 = vld [vmem:[%s13 + $0x48] sm:$0xff]
  %v1640 = vld [vmem:[%s13 + $0x50] sm:$0xff]
  %v1641 = vld [vmem:[%s13 + $0x58] sm:$0xff]
  %v1642 = vld [vmem:[%s13 + $0x60] sm:$0xff]
  %v1643 = vld [vmem:[%s13 + $0x68] sm:$0xff]
  %v1644 = vld [vmem:[%s13 + $0x70] sm:$0xff]
  %v1645 = vld [vmem:[%s13 + $0x78] sm:$0xff]
  %v1646 = vld [vmem:[%s13 + $0x80] sm:$0xff]
  %v1647 = vld [vmem:[%s13 + $0x88] sm:$0xff]
  %v1648 = vld [vmem:[%s13 + $0x90] sm:$0xff]
  %v1649 = vld [vmem:[%s13 + $0x98] sm:$0xff]
  %v1650 = vld [vmem:[%s13 + $0xa0] sm:$0xff]
  %v1651 = vld [vmem:[%s13 + $0xa8] sm:$0xff]
  %v1652 = vld [vmem:[%s13 + $0xb0] sm:$0xff]
  %v1653 = vld [vmem:[%s13 + $0xb8] sm:$0xff]
  %v1654 = vld [vmem:[%s13 + $0xc0] sm:$0xff]
  %v1655 = vld [vmem:[%s13 + $0xc8] sm:$0xff]
  %v1656 = vld [vmem:[%s13 + $0xd0] sm:$0xff]
  %v1657 = vld [vmem:[%s13 + $0xd8] sm:$0xff]
  %v1658 = vld [vmem:[%s13 + $0xe0] sm:$0xff]
  %v1659 = vld [vmem:[%s13 + $0xe8] sm:$0xff]
  %v1660 = vld [vmem:[%s13 + $0xf0] sm:$0xff]
  %v1661 = vld [vmem:[%s13 + $0xf8] sm:$0xff]
  %v1662 = vld [vmem:[%s14] sm:$0x1]
  %v1664 = vlaneseq
  %v1665 = vshrl.u32 %v1664, 7
  %v1666 = vsub.s32 0, %v1665
  %v1667 = vrot.slane %v1662, %v1666
  %1669 = vmatprep.subr.mxu0 0.0
  %1670 = vmatpush1.msra.mxu0 %v1645
  %1671 = vmatprep.subr.mxu0 0.0
  %1672 = vmatpush1.msra.mxu0 %v1644
  %1673 = vmatprep.subr.mxu0 0.0
  %1674 = vmatpush1.msra.mxu0 %v1643
  %1675 = vmatprep.subr.mxu0 0.0
  %1676 = vmatpush1.msra.mxu0 %v1642
  %1677 = vmatprep.subr.mxu0 0.0
  %1678 = vmatpush1.msra.mxu0 %v1641
  %1679 = vmatprep.subr.mxu0 0.0
  %1680 = vmatpush1.msra.mxu0 %v1640
  %1681 = vmatprep.subr.mxu0 0.0
  %1682 = vmatpush1.msra.mxu0 %v1639
  %1683 = vmatprep.subr.mxu0 0.0
  %1684 = vmatpush1.msra.mxu0 %v1638
  %1685 = vmatprep.subr.mxu0 0.0
  %1686 = vmatpush1.msra.mxu0 %v1637
  %1687 = vmatprep.subr.mxu0 0.0
  %1688 = vmatpush1.msra.mxu0 %v1636
  %1689 = vmatprep.subr.mxu0 0.0
  %1690 = vmatpush1.msra.mxu0 %v1635
  %1691 = vmatprep.subr.mxu0 0.0
  %1692 = vmatpush1.msra.mxu0 %v1634
  %1693 = vmatprep.subr.mxu0 0.0
  %1694 = vmatpush1.msra.mxu0 %v1633
  %1695 = vmatprep.subr.mxu0 0.0
  %1696 = vmatpush1.msra.mxu0 %v1632
  %1697 = vmatprep.subr.mxu0 0.0
  %1698 = vmatpush1.msra.mxu0 %v1631
  %1699 = vmatprep.subr.mxu0 0.0
  %1700 = vmatpush1.msra.mxu0 %v1630
  %1701 = vmatprep.subr.mxu0 0.0
  %1702 = vmatpush2.msra.mxu0 %v1661
  %1703 = vmatprep.subr.mxu0 0.0
  %1704 = vmatpush2.msra.mxu0 %v1660
  %1705 = vmatprep.subr.mxu0 0.0
  %1706 = vmatpush2.msra.mxu0 %v1659
  %1707 = vmatprep.subr.mxu0 0.0
  %1708 = vmatpush2.msra.mxu0 %v1658
  %1709 = vmatprep.subr.mxu0 0.0
  %1710 = vmatpush2.msra.mxu0 %v1657
  %1711 = vmatprep.subr.mxu0 0.0
  %1712 = vmatpush2.msra.mxu0 %v1656
  %1713 = vmatprep.subr.mxu0 0.0
  %1714 = vmatpush2.msra.mxu0 %v1655
  %1715 = vmatprep.subr.mxu0 0.0
  %1716 = vmatpush2.msra.mxu0 %v1654
  %1717 = vmatprep.subr.mxu0 0.0
  %1718 = vmatpush2.msra.mxu0 %v1653
  %1719 = vmatprep.subr.mxu0 0.0
  %1720 = vmatpush2.msra.mxu0 %v1652
  %1721 = vmatprep.subr.mxu0 0.0
  %1722 = vmatpush2.msra.mxu0 %v1651
  %1723 = vmatprep.subr.mxu0 0.0
  %1724 = vmatpush2.msra.mxu0 %v1650
  %1725 = vmatprep.subr.mxu0 0.0
  %1726 = vmatpush2.msra.mxu0 %v1649
  %1727 = vmatprep.subr.mxu0 0.0
  %1728 = vmatpush2.msra.mxu0 %v1648
  %1729 = vmatprep.subr.mxu0 0.0
  %1730 = vmatpush2.msra.mxu0 %v1647
  %1731 = vmatprep.subr.mxu0 0.0
  %1732 = vmatpush2.msra.mxu0 %v1646
  %1733 = vmatprep.mubr.f32.mxu0 %v1629
  %1734 = vmatmul.mubr.f32.gmra.mxu0 %v1628
  %v1735 = vpop.f32.mrf.mxu0
  %v1736 = vadd.f32 %v1667, %v1735
  %v1737 = vpop.f32.mrf.mxu0
  %1738 = vdwg.mxu0
  %1739 = vst.msk [vmem:[%s17] sm:$0xff] %vm128, %v1736
  // Predicated region
  $region62: #{gimvi_vae_forward.1} parent=0 // pred_check
    _
  $region63: #{gimvi_vae_forward.1} parent=0 // pred_check_branch
    %1741 = sbr.rel (0) target = $region65
  $region64: #{gimvi_vae_forward.1} parent=0 // pred_region
    _
  $region65: #{gimvi_vae_forward.1} parent=0 // pred_fallthru
    _
  // Predicated region
  $region66: #{gimvi_vae_forward.1} parent=0 // pred_check
    _
  $region67: #{gimvi_vae_forward.1} parent=0 // pred_check_branch
    %1743 = sbr.rel (0) target = $region69
  $region68: #{gimvi_vae_forward.1} parent=0 // pred_region
    _
  $region69: #{gimvi_vae_forward.1} parent=0 // pred_fallthru
    _
  // Predicated region
  $region70: #{gimvi_vae_forward.1} parent=0 // pred_check
    _
  $region71: #{gimvi_vae_forward.1} parent=0 // pred_check_branch
    %1745 = sbr.rel (0) target = $region73
  $region72: #{gimvi_vae_forward.1} parent=0 // pred_region
    _
  $region73: #{gimvi_vae_forward.1} parent=0 // pred_fallthru
    _
  // Predicated region
  $region74: #{gimvi_vae_forward.1} parent=0 // pred_check
    _
  $region75: #{gimvi_vae_forward.1} parent=0 // pred_check_branch
    %1747 = sbr.rel (0) target = $region77
  $region76: #{gimvi_vae_forward.1} parent=0 // pred_region
    _
  $region77: #{gimvi_vae_forward.1} parent=0 // pred_fallthru
    _
  // Predicated region
  $region78: #{gimvi_vae_forward.1} parent=0 // pred_check
    _
  $region79: #{gimvi_vae_forward.1} parent=0 // pred_check_branch
    %1749 = sbr.rel (0) target = $region81
  $region80: #{gimvi_vae_forward.1} parent=0 // pred_region
    _
  $region81: #{gimvi_vae_forward.1} parent=0 // pred_fallthru
    _
  // Predicated region
  $region82: #{gimvi_vae_forward.1} parent=0 // pred_check
    _
  $region83: #{gimvi_vae_forward.1} parent=0 // pred_check_branch
    %1751 = sbr.rel (0) target = $region85
  $region84: #{gimvi_vae_forward.1} parent=0 // pred_region
    _
  $region85: #{gimvi_vae_forward.1} parent=0 // pred_fallthru
    _

</llo_original>
